<compile_context>
chip_gen: v7x
topology: tpu7x:2x2x1
jax: 0.10.0
libtpu: 0.0.40
codegen_flags: <defaults>
</compile_context>

<pallas_src>
import functools
import itertools
from math import ceil

import jax
import jax.numpy as jnp
import numpy as np
from jax.experimental import pallas as pl
from jax.experimental.pallas import tpu as pltpu

base_model = [[1, 16, 1, 1, 3], [6, 24, 2, 2, 3], [6, 40, 2, 2, 5],
              [6, 80, 3, 2, 3], [6, 112, 3, 1, 5], [6, 192, 4, 2, 5],
              [6, 320, 1, 1, 3]]

phi_values = {'b0': (0, 224, 0.2), 'b1': (0.5, 240, 0.2), 'b2': (1, 260, 0.3),
              'b3': (2, 300, 0.3), 'b4': (3, 380, 0.4), 'b5': (4, 456, 0.4),
              'b6': (5, 528, 0.5), 'b7': (6, 600, 0.5)}

ACT_DTYPE = jnp.bfloat16     # activation / MXU operand dtype (f32 accumulation)


def _round_up(x, m):
    return ((x + m - 1) // m) * m


# ----------------------------------------------------------------------------
# Pallas kernel: tiled matmul + bias + activation (stem / expand / last conv)
# ----------------------------------------------------------------------------
def _mm_kernel(a_ref, w_ref, b_ref, o_ref, *, act):
    acc = jnp.dot(a_ref[...], w_ref[...], preferred_element_type=jnp.float32)
    acc = acc + b_ref[...]
    if act == "silu":
        acc = acc * jax.nn.sigmoid(acc)
    elif act == "sigmoid":
        acc = jax.nn.sigmoid(acc)
    o_ref[...] = acc.astype(o_ref.dtype)


def _pick_tn(N):
    if N <= 512:
        return N
    for cand in (512, 384, 256, 128):
        if N % cand == 0:
            return cand
    return N


@functools.lru_cache(maxsize=None)
def _build_matmul(Mp, K, N, tm, tn, act, out_dtype):
    kern = functools.partial(_mm_kernel, act=act)
    f = pl.pallas_call(
        kern,
        out_shape=jax.ShapeDtypeStruct((Mp, N), out_dtype),
        grid=(Mp // tm, N // tn),
        in_specs=[
            pl.BlockSpec((tm, K), lambda i, j: (i, 0)),
            pl.BlockSpec((K, tn), lambda i, j: (0, j)),
            pl.BlockSpec((1, tn), lambda i, j: (0, j)),
        ],
        out_specs=pl.BlockSpec((tm, tn), lambda i, j: (i, j)),
        compiler_params=pltpu.CompilerParams(
            dimension_semantics=("parallel", "parallel")),
    )
    return jax.jit(f)


def matmul_bias_act(a, w, bias, act="none", out_dtype=ACT_DTYPE):
    """out = act(a @ w + bias); a:(M,K) bf16, w:(K,N) bf16, bias:(N,) f32."""
    M, K = a.shape
    N = w.shape[1]
    tm = 512 if M >= 512 else (256 if M >= 256 else _round_up(M, 8))
    Mp = _round_up(M, tm)
    if Mp != M:
        a = jnp.pad(a, ((0, Mp - M), (0, 0)))
    tn = _pick_tn(N)
    out = _build_matmul(Mp, K, N, tm, tn, act, out_dtype)(
        a.astype(ACT_DTYPE), w, bias.reshape(1, N).astype(jnp.float32))
    return out[:M] if Mp != M else out


# ----------------------------------------------------------------------------
# Pallas kernel: 1x1 projection matmul with fused SE-gate and residual add
# ----------------------------------------------------------------------------
def _proj_kernel(x_ref, g_ref, w_ref, b_ref, *rest, use_res):
    if use_res:
        r_ref, o_ref = rest
    else:
        (o_ref,) = rest
    # SE gating applied to the matmul LHS inside the kernel (per-row broadcast)
    xg = (x_ref[...].astype(jnp.float32) * g_ref[...]).astype(jnp.bfloat16)
    acc = jnp.dot(xg, w_ref[...], preferred_element_type=jnp.float32)
    acc = acc + b_ref[...]
    if use_res:
        acc = acc + r_ref[...].astype(jnp.float32)
    o_ref[...] = acc.astype(o_ref.dtype)


@functools.lru_cache(maxsize=None)
def _build_proj(Nb, Mp, K, N, tm, use_res):
    kern = functools.partial(_proj_kernel, use_res=use_res)
    in_specs = [
        pl.BlockSpec((None, tm, K), lambda b, i: (b, i, 0)),
        pl.BlockSpec((None, 1, K), lambda b, i: (b, 0, 0)),
        pl.BlockSpec((K, N), lambda b, i: (0, 0)),
        pl.BlockSpec((1, N), lambda b, i: (0, 0)),
    ]
    if use_res:
        in_specs.append(pl.BlockSpec((None, tm, N), lambda b, i: (b, i, 0)))
    f = pl.pallas_call(
        kern,
        out_shape=jax.ShapeDtypeStruct((Nb, Mp, N), ACT_DTYPE),
        grid=(Nb, Mp // tm),
        in_specs=in_specs,
        out_specs=pl.BlockSpec((None, tm, N), lambda b, i: (b, i, 0)),
        compiler_params=pltpu.CompilerParams(
            dimension_semantics=("parallel", "parallel")),
    )
    return jax.jit(f)


def proj_gate_residual(x, gate, w, bias, residual=None):
    """y = (x * gate) @ w + bias [+ residual]; x:(Nb,M,K) gate:(Nb,1,K)."""
    Nb, M, K = x.shape
    N = w.shape[1]
    tm = 512 if M >= 512 else (256 if M >= 256 else _round_up(M, 8))
    Mp = _round_up(M, tm)
    if Mp != M:
        x = jnp.pad(x, ((0, 0), (0, Mp - M), (0, 0)))
        if residual is not None:
            residual = jnp.pad(residual, ((0, 0), (0, Mp - M), (0, 0)))
    use_res = residual is not None
    args = [x.astype(ACT_DTYPE), gate.astype(jnp.float32), w,
            bias.reshape(1, N).astype(jnp.float32)]
    if use_res:
        args.append(residual.astype(ACT_DTYPE))
    out = _build_proj(Nb, Mp, K, N, tm, use_res)(*args)
    return out[:, :M] if Mp != M else out


# ----------------------------------------------------------------------------
# Pallas kernel: direct depthwise conv + folded BN + SiLU (no im2col in HBM)
# ----------------------------------------------------------------------------
def _dw_kernel(*refs, k, s, oh_t, OW, nphase):
    x_refs = refs[:nphase]                      # each (Hp, Wp_phase, C)
    w_ref, b_ref, o_ref = refs[nphase], refs[nphase + 1], refs[nphase + 2]
    i = pl.program_id(1)
    bias = b_ref[...]                           # (1, C) f32
    C = bias.shape[1]
    for r in range(oh_t):                       # static unroll, oh_t small
        acc = jnp.zeros((OW, C), jnp.float32) + bias
        for di in range(k):
            row = (i * oh_t + r) * s + di       # dynamic H index
            rows = [x_refs[p][row] for p in range(nphase)]   # (Wp_phase, C)
            for dj in range(k):
                p = dj % nphase
                off = dj // nphase
                xs = rows[p][off:off + OW, :].astype(jnp.float32)
                acc = acc + xs * w_ref[di * k + dj]
        o_ref[r] = (acc * jax.nn.sigmoid(acc)).astype(o_ref.dtype)   # SiLU


@functools.lru_cache(maxsize=None)
def _build_dw(Nb, Hp, phase_widths, C, k, s, oh_t, OHp, OW):
    nphase = len(phase_widths)
    kern = functools.partial(_dw_kernel, k=k, s=s, oh_t=oh_t, OW=OW,
                             nphase=nphase)
    in_specs = [pl.BlockSpec((None, Hp, w, C), lambda b, i: (b, 0, 0, 0))
                for w in phase_widths]
    in_specs += [
        pl.BlockSpec((k * k, C), lambda b, i: (0, 0)),
        pl.BlockSpec((1, C), lambda b, i: (0, 0)),
    ]
    f = pl.pallas_call(
        kern,
        out_shape=jax.ShapeDtypeStruct((Nb, OHp, OW, C), ACT_DTYPE),
        grid=(Nb, OHp // oh_t),
        in_specs=in_specs,
        out_specs=pl.BlockSpec((None, oh_t, OW, C), lambda b, i: (b, i, 0, 0)),
        compiler_params=pltpu.CompilerParams(
            dimension_semantics=("parallel", "arbitrary")),
    )
    return jax.jit(f)


def depthwise_conv_silu(x, w, bias, k, s, pad):
    """x:(Nb,H,W,C) -> silu(depthwise_conv(x) * scale + shift), (Nb,OH,OW,C)."""
    Nb, H, W, C = x.shape
    OH = (H + 2 * pad - k) // s + 1
    OW = (W + 2 * pad - k) // s + 1
    oh_t = max(1, min(OH, 256 // max(OW, 1)))   # ~256 output rows per tile
    OHp = _round_up(OH, oh_t)
    rows_needed = (OHp - 1) * s + k
    extra_h = max(0, rows_needed - (H + 2 * pad))
    xp = jnp.pad(x, ((0, 0), (pad, pad + extra_h), (pad, pad), (0, 0)))
    Hp = H + 2 * pad + extra_h
    # Stride-2: split columns into phases once (JAX glue) so the kernel only
    # ever issues contiguous, unstrided loads.
    if s == 1:
        phases = [xp]
    else:
        phases = [xp[:, :, p::s, :] for p in range(s)]
    phase_widths = tuple(int(ph.shape[2]) for ph in phases)
    f = _build_dw(Nb, Hp, phase_widths, C, k, s, oh_t, OHp, OW)
    out = f(*[ph.astype(ACT_DTYPE) for ph in phases], w,
            bias.reshape(1, C).astype(jnp.float32))
    return out[:, :OH] if OHp != OH else out


# ----------------------------------------------------------------------------
# Pallas kernel: fused SE squeeze (global-avg-pool -> fc1+SiLU -> fc2+sigmoid)
# ----------------------------------------------------------------------------
def _se_kernel(x_ref, w1_ref, b1_ref, w2_ref, b2_ref, o_ref, acc_ref, *, inv_hw):
    j = pl.program_id(1)

    @pl.when(j == 0)
    def _():
        acc_ref[...] = jnp.zeros_like(acc_ref)

    acc_ref[...] += jnp.sum(x_ref[...].astype(jnp.float32), axis=0,
                            keepdims=True)

    @pl.when(j == pl.num_programs(1) - 1)
    def _():
        pooled = acc_ref[...] * inv_hw                               # (1, C)
        h = jnp.dot(pooled, w1_ref[...],
                    preferred_element_type=jnp.float32) + b1_ref[...]
        h = h * jax.nn.sigmoid(h)                                    # SiLU
        g = jnp.dot(h, w2_ref[...],
                    preferred_element_type=jnp.float32) + b2_ref[...]
        o_ref[...] = jax.nn.sigmoid(g)


@functools.lru_cache(maxsize=None)
def _build_se(Nb, HWp, C, Cr, thw, inv_hw):
    kern = functools.partial(_se_kernel, inv_hw=inv_hw)
    f = pl.pallas_call(
        kern,
        out_shape=jax.ShapeDtypeStruct((Nb, 1, C), jnp.float32),
        grid=(Nb, HWp // thw),
        in_specs=[
            pl.BlockSpec((None, thw, C), lambda b, j: (b, j, 0)),
            pl.BlockSpec((C, Cr), lambda b, j: (0, 0)),
            pl.BlockSpec((1, Cr), lambda b, j: (0, 0)),
            pl.BlockSpec((Cr, C), lambda b, j: (0, 0)),
            pl.BlockSpec((1, C), lambda b, j: (0, 0)),
        ],
        out_specs=pl.BlockSpec((None, 1, C), lambda b, j: (b, 0, 0)),
        scratch_shapes=[pltpu.VMEM((1, C), jnp.float32)],
        compiler_params=pltpu.CompilerParams(
            dimension_semantics=("parallel", "arbitrary")),
    )
    return jax.jit(f)


def se_gate(x, w1, b1, w2, b2):
    """x:(Nb,HW,C) -> gate:(Nb,1,C) = sigmoid(W2 @ silu(W1 @ mean(x)))."""
    Nb, HW, C = x.shape
    Cr = w1.shape[1]
    thw = 512 if HW >= 512 else HW
    HWp = _round_up(HW, thw)
    if HWp != HW:
        x = jnp.pad(x, ((0, 0), (0, HWp - HW), (0, 0)))     # zero rows: sum ok
    return _build_se(Nb, HWp, C, Cr, thw, float(1.0 / HW))(
        x.astype(ACT_DTYPE), w1, b1.reshape(1, Cr), w2, b2.reshape(1, C))


# ----------------------------------------------------------------------------
# Pallas kernel: fused final global-avg-pool + classifier Linear
# ----------------------------------------------------------------------------
def _head_kernel(x_ref, w_ref, b_ref, o_ref, acc_ref, *, inv_hw):
    j = pl.program_id(1)

    @pl.when(j == 0)
    def _():
        acc_ref[...] = jnp.zeros_like(acc_ref)

    acc_ref[...] += jnp.sum(x_ref[...].astype(jnp.float32), axis=0,
                            keepdims=True)

    @pl.when(j == pl.num_programs(1) - 1)
    def _():
        pooled = acc_ref[...] * inv_hw
        o_ref[...] = jnp.dot(pooled, w_ref[...],
                             preferred_element_type=jnp.float32) + b_ref[...]


@functools.lru_cache(maxsize=None)
def _build_head(Nb, HWp, C, NC, thw, inv_hw):
    kern = functools.partial(_head_kernel, inv_hw=inv_hw)
    f = pl.pallas_call(
        kern,
        out_shape=jax.ShapeDtypeStruct((Nb, 1, NC), jnp.float32),
        grid=(Nb, HWp // thw),
        in_specs=[
            pl.BlockSpec((None, thw, C), lambda b, j: (b, j, 0)),
            pl.BlockSpec((C, NC), lambda b, j: (0, 0)),
            pl.BlockSpec((1, NC), lambda b, j: (0, 0)),
        ],
        out_specs=pl.BlockSpec((None, 1, NC), lambda b, j: (b, 0, 0)),
        scratch_shapes=[pltpu.VMEM((1, C), jnp.float32)],
        compiler_params=pltpu.CompilerParams(
            dimension_semantics=("parallel", "arbitrary")),
    )
    return jax.jit(f)


def head_pool_linear(x, w, b):
    """x:(Nb,HW,C) -> logits:(Nb,num_classes) = mean(x) @ w + b."""
    Nb, HW, C = x.shape
    NC = w.shape[1]
    thw = 512 if HW >= 512 else HW
    HWp = _round_up(HW, thw)
    if HWp != HW:
        x = jnp.pad(x, ((0, 0), (0, HWp - HW), (0, 0)))
    out = _build_head(Nb, HWp, C, NC, thw, float(1.0 / HW))(
        x.astype(ACT_DTYPE), w, b.reshape(1, NC))
    return out.reshape(Nb, NC)


# ----------------------------------------------------------------------------
# JAX glue: im2col patch extraction (only for stem / expand / 1x1 convs)
# ----------------------------------------------------------------------------
def _extract_patches(x, k, stride, pad):
    """x:(N,H,W,C) -> (N,OH,OW,k*k,C), OH, OW."""
    N, H, W, C = x.shape
    xp = jnp.pad(x, ((0, 0), (pad, pad), (pad, pad), (0, 0)))
    OH = (H + 2 * pad - k) // stride + 1
    OW = (W + 2 * pad - k) // stride + 1
    taps = []
    for di in range(k):
        for dj in range(k):
            taps.append(xp[:, di:di + stride * OH:stride,
                           dj:dj + stride * OW:stride, :])
    p = jnp.stack(taps, axis=3)
    return p, OH, OW


# ----------------------------------------------------------------------------
# Parameter construction (deterministic, in-script)
# ----------------------------------------------------------------------------
_param_key = jax.random.PRNGKey(42)
_kc = itertools.count()


def _next_key():
    return jax.random.fold_in(_param_key, next(_kc))


def _bn_fold(cout):
    gamma = 1.0 + 0.1 * jax.random.normal(_next_key(), (cout,), jnp.float32)
    beta = 0.1 * jax.random.normal(_next_key(), (cout,), jnp.float32)
    running_mean = jnp.zeros((cout,), jnp.float32)
    running_var = jnp.ones((cout,), jnp.float32)
    scale = gamma / jnp.sqrt(running_var + 1e-5)
    shift = beta - running_mean * scale
    return scale, shift


def init_conv_bn(k, cin, cout):
    # conv weight in (k*k*cin, cout) matmul layout (tap-major, then cin)
    w = jax.random.normal(_next_key(), (k * k * cin, cout), jnp.float32)
    w = w * (1.0 / np.sqrt(k * k * cin))
    scale, shift = _bn_fold(cout)
    return {"w": (w * scale[None, :]).astype(ACT_DTYPE), "b": shift}


def init_dw_bn(k, c):
    w = jax.random.normal(_next_key(), (k * k, c), jnp.float32) * (1.0 / np.sqrt(k * k))
    scale, shift = _bn_fold(c)
    return {"w": w * scale[None, :], "b": shift}        # f32 (VPU path)


def init_linear(cin, cout):
    w = jax.random.normal(_next_key(), (cin, cout), jnp.float32) * (1.0 / np.sqrt(cin))
    b = 0.1 * jax.random.normal(_next_key(), (cout,), jnp.float32)
    return {"w": w, "b": b}                              # f32 (tiny matmuls)


def build_efficientnet(version="b0", num_classes=10):
    phi, _, _dropout_rate = phi_values[version]
    depth_factor = 1.2 ** phi
    width_factor = 1.1 ** phi
    last_channels = ceil(1280 * width_factor)

    blocks = []
    channels = int(32 * width_factor)
    blocks.append({"type": "cnn", "p": init_conv_bn(3, 3, channels),
                   "k": 3, "s": 2, "pad": 1})
    in_ch = channels
    for expand_ratio, c, repeats, stride, k in base_model:
        out_ch = 4 * ceil(int(c * width_factor) / 4)
        layers_repeats = ceil(repeats * depth_factor)
        for layer in range(layers_repeats):
            s = stride if layer == 0 else 1
            hidden = in_ch * expand_ratio
            reduced = int(in_ch / 4)
            blk = {"type": "irb", "k": k, "s": s, "pad": k // 2,
                   "use_res": (in_ch == out_ch and s == 1),
                   "expand": in_ch != hidden}
            if blk["expand"]:
                blk["expand_conv"] = init_conv_bn(3, in_ch, hidden)
            blk["dw"] = init_dw_bn(k, hidden)
            blk["se1"] = init_linear(hidden, reduced)
            blk["se2"] = init_linear(reduced, hidden)
            blk["proj"] = init_conv_bn(1, hidden, out_ch)   # conv(no bias)+BN
            blocks.append(blk)
            in_ch = out_ch
    blocks.append({"type": "cnn", "p": init_conv_bn(1, in_ch, last_channels),
                   "k": 1, "s": 1, "pad": 0})
    head = init_linear(last_channels, num_classes)
    return {"blocks": blocks, "head": head}


# ----------------------------------------------------------------------------
# Forward pass
# ----------------------------------------------------------------------------
def cnn_block_fwd(x, p, k, s, pad):
    """Conv(bias=False)+BN+SiLU fused into one tiled Pallas MXU matmul."""
    N, H, W, C = x.shape
    if k == 1 and s == 1 and pad == 0:
        patches = x.reshape(N * H * W, C)
        OH, OW = H, W
    else:
        patches, OH, OW = _extract_patches(x, k, s, pad)   # (N,OH,OW,kk,C)
        patches = patches.reshape(N * OH * OW, -1)
    y = matmul_bias_act(patches, p["w"], p["b"], act="silu")
    return y.reshape(N, OH, OW, -1)


def irb_fwd(x, blk):
    inputs = x
    if blk["expand"]:
        x = cnn_block_fwd(x, blk["expand_conv"], 3, 1, 1)

    # depthwise conv + BN + SiLU (direct kernel, no im2col HBM blow-up)
    y = depthwise_conv_silu(x, blk["dw"]["w"], blk["dw"]["b"],
                            blk["k"], blk["s"], blk["pad"])
    Nb, OH, OW, C = y.shape
    xf = y.reshape(Nb, OH * OW, C)

    # Squeeze-Excitation squeeze path fused into one kernel -> (Nb,1,C) gate
    gate = se_gate(xf, blk["se1"]["w"], blk["se1"]["b"],
                   blk["se2"]["w"], blk["se2"]["b"])

    # 1x1 projection conv + BN, with SE gating and residual fused in epilogue.
    residual = None
    if blk["use_res"]:
        cout = blk["proj"]["w"].shape[1]
        # TODO(synk): stochastic_depth is identity at inference.
        residual = inputs.reshape(Nb, OH * OW, cout)
    y = proj_gate_residual(xf, gate, blk["proj"]["w"], blk["proj"]["b"],
                           residual)
    return y.reshape(Nb, OH, OW, -1)


def efficientnet_forward(params, x_nchw):
    # accept NCHW (PyTorch convention), compute in NHWC / bf16
    x = jnp.transpose(x_nchw, (0, 2, 3, 1)).astype(ACT_DTYPE)
    for blk in params["blocks"]:
        if blk["type"] == "cnn":
            x = cnn_block_fwd(x, blk["p"], blk["k"], blk["s"], blk["pad"])
        else:
            x = irb_fwd(x, blk)
    Nb, H, W, C = x.shape
    # AdaptiveAvgPool2d(1) + (Dropout=identity) + Linear fused in one kernel.
    # TODO(synk): nn.Dropout is identity at inference.
    logits = head_pool_linear(x.reshape(Nb, H * W, C),
                              params["head"]["w"], params["head"]["b"])
    return logits


# ----------------------------------------------------------------------------
if __name__ == "__main__":
    num_classes = 10
    params = build_efficientnet("b0", num_classes=num_classes)

    x = jax.random.normal(jax.random.PRNGKey(0), (2, 3, 64, 64), jnp.float32)

    out = efficientnet_forward(params, x)
    out = jax.block_until_ready(out)

    assert out.shape == (2, num_classes), out.shape
    assert bool(jnp.all(jnp.isfinite(out)))
    print("KERNEL_OK")
</pallas_src>

<mosaic_0001>
module attributes {stable_mosaic.version = 11 : i64} {
  func.func @_mm_kernel(%arg0: i32, %arg1: i32, %arg2: memref<512x27xbf16, #tpu.memory_space<vmem>>, %arg3: memref<27x32xbf16, #tpu.memory_space<vmem>>, %arg4: memref<1x32xf32, #tpu.memory_space<vmem>>, %arg5: memref<512x32xbf16, #tpu.memory_space<vmem>>) attributes {dimension_semantics = [#tpu.dimension_semantics<parallel>, #tpu.dimension_semantics<parallel>], iteration_bounds = array<i64: 4, 1>, scalar_prefetch = 0 : i64, scratch_operands = 0 : i64, tpu.core_type = #tpu.core_type<tc>, window_params = [{transform_indices = @transform_0, window_bounds = array<i64: 512, 27>}, {transform_indices = @transform_1, window_bounds = array<i64: 27, 32>}, {transform_indices = @transform_2, window_bounds = array<i64: 1, 32>}, {transform_indices = @transform_3, window_bounds = array<i64: 512, 32>}]} {
    %c0 = arith.constant 0 : index
    %c0_0 = arith.constant 0 : index
    %0 = vector.load %arg2[%c0, %c0_0] : memref<512x27xbf16, #tpu.memory_space<vmem>>, vector<512x27xbf16>
    %c0_1 = arith.constant 0 : index
    %c0_2 = arith.constant 0 : index
    %1 = vector.load %arg3[%c0_1, %c0_2] : memref<27x32xbf16, #tpu.memory_space<vmem>>, vector<27x32xbf16>
    %cst = arith.constant dense<0.000000e+00> : vector<512x32xf32>
    %2 = tpu.matmul %0, %1, %cst {dimension_numbers = #tpu.dot_dimension_numbers<[1], [0], [0], [1], [0, 0, 1, 1], [], []>} : vector<512x27xbf16>, vector<27x32xbf16>, vector<512x32xf32> -> vector<512x32xf32>
    %c0_3 = arith.constant 0 : index
    %c0_4 = arith.constant 0 : index
    %3 = vector.load %arg4[%c0_3, %c0_4] : memref<1x32xf32, #tpu.memory_space<vmem>>, vector<1x32xf32>
    %4 = vector.broadcast %3 : vector<1x32xf32> to vector<512x32xf32>
    %5 = arith.addf %2, %4 : vector<512x32xf32>
    %6 = arith.negf %5 : vector<512x32xf32>
    %7 = math.exp %6 : vector<512x32xf32>
    %cst_5 = arith.constant 1.000000e+00 : f32
    %8 = vector.broadcast %cst_5 : f32 to vector<512x32xf32>
    %9 = arith.addf %8, %7 : vector<512x32xf32>
    %10 = arith.divf %8, %9 : vector<512x32xf32>
    %11 = arith.mulf %5, %10 : vector<512x32xf32>
    %12 = arith.truncf %11 : vector<512x32xf32> to vector<512x32xbf16>
    %c0_6 = arith.constant 0 : index
    %c0_7 = arith.constant 0 : index
    %13 = vector.load %arg5[%c0_6, %c0_7] : memref<512x32xbf16, #tpu.memory_space<vmem>>, vector<512x32xbf16>
    tpu.vector_store %arg5[%c0_6, %c0_7], %12 {strides = array<i32>} : memref<512x32xbf16, #tpu.memory_space<vmem>>, vector<512x32xbf16>,
    return
  }
  func.func @transform_0(%arg0: i32, %arg1: i32) -> (i32, i32) {
    %c0_i32 = arith.constant 0 : i32
    %c0_i32_0 = arith.constant 0 : i32
    return %arg0, %c0_i32 : i32, i32
  }
  func.func @transform_1(%arg0: i32, %arg1: i32) -> (i32, i32) {
    %c0_i32 = arith.constant 0 : i32
    %c0_i32_0 = arith.constant 0 : i32
    return %c0_i32, %arg1 : i32, i32
  }
  func.func @transform_2(%arg0: i32, %arg1: i32) -> (i32, i32) {
    %c0_i32 = arith.constant 0 : i32
    %c0_i32_0 = arith.constant 0 : i32
    return %c0_i32, %arg1 : i32, i32
  }
  func.func @transform_3(%arg0: i32, %arg1: i32) -> (i32, i32) {
    %c0_i32 = arith.constant 0 : i32
    return %arg0, %arg1 : i32, i32
  }
}

</mosaic_0001>

<llo_original>
// kernel: tpu_custom_call.1
$region0: #{tpu_custom_call.1}
  #allocation0 [shape = 'u32[]', space=smem, size = 0x4, offset = 0x4, fixed_abs, tag = 'smem constant byte address 0x4 - core index']
  #allocation1 [shape = 'u32[144,128]{1,0:T(1,128)}', space=vmem, size = 0x12000, scoped, tag = 'internal scratch']
  %s0 = inlined_call_operand.vmem [shape: bf16[2048,27], index: 0, kind: input, shape index: {}]
  %s1 = inlined_call_operand.vmem [shape: bf16[27,32], index: 1, kind: input, shape index: {}]
  %s2 = inlined_call_operand.vmem [shape: f32[1,32], index: 2, kind: input, shape index: {}]
  %s3 = inlined_call_operand.vmem [shape: bf16[2048,32], index: 3, kind: output, shape index: {}]
  %s4 = sld [smem:[#allocation0]]
  $region45: #{tpu_custom_call.1} parent=0
    _
  %s6 = ssub.s32 1, %s4
  %s7 = scalar_select 0, %s6, %s4
  loop: start=0, step=1, limit=6
  $region2: #{tpu_custom_call.1} parent=0 // loop_pre_header
    _
  $region3: #{tpu_custom_call.1} parent=0 // loop_header
    %s9 = sphi 0, %s13
    %p10 = scmp.ge.s32.totalorder %s9, 6
    %s16 = sphi 0, %s28
    %s17 = sphi 0, %s24
    %s18 = sphi 0, %s16
    %s19 = sphi 0, %s17
    %s20 = sphi 0, %s18
    %s21 = sphi 0, %s19
    %s31 = sphi 0, %s33
    %s34 = sphi 0, %s31
    %s35 = sphi 0, %s34
    %s51 = sphi 0, %s35
    %s57 = sphi 0, %s59
    %s60 = sphi 0, %s57
    %s61 = sphi 0, %s60
    %s77 = sphi 0, %s61
    %s83 = sphi 0, %s85
    %s86 = sphi 0, %s83
    %s87 = sphi 0, %s86
    %s103 = sphi 0, %s87
    %s111 = sphi 0, %s113
    %s114 = sphi 0, %s111
    %s115 = sphi 0, %s114
    %s131 = sphi 0, %s115
  $region4: #{tpu_custom_call.1} parent=0 // loop_header_branch
    %12 = sbr.rel (%p10) target = $region8
  $region5: #{tpu_custom_call.1} parent=0 // loop_body
    %s14 = ssub.s32 %s9, 1
    %s15 = ssub.s32 %s9, 2
    %s22 = sadd.s32 1, %s17
    %p23 = scmp.ge.s32.totalorder %s22, 1
    %s24 = scalar_select %p23, 0, %s22
    %s25 = sadd.s32 1, %s16
    %s26 = scalar_select %p23, %s25, %s16
    %p27 = scmp.ge.s32.totalorder %s26, 4
    %s28 = scalar_select %p27, 0, %s26
    %s29 = ssub.s32 %s16, %s28
    %p30 = scmp.eq.s32.totalorder %s29, 0
    %s32 = sadd.s32 %s31, 1
    %s33 = scalar_select %p30, %s31, %s32
    %p36 = pneg %p30
    %p37 = scmp.eq.s32.totalorder %s9, 3
    %p38 = por %p36, %p37
    %p39 = scmp.ne.s32.totalorder %s31, %s34
    %p40 = scmp.eq.s32.totalorder %s9, 0
    %p41 = por %p39, %p40
    %p42 = scmp.ne.s32.totalorder %s31, %s34
    %p43 = scmp.eq.s32.totalorder %s14, 3
    %p44 = por %p42, %p43
    %p45 = scmp.ne.s32.totalorder %s34, %s35
    %p46 = scmp.eq.s32.totalorder %s14, 0
    %p47 = por %p45, %p46
    %p48 = scmp.ne.s32.totalorder %s34, %s35
    %p49 = scmp.eq.s32.totalorder %s15, 3
    %p50 = por %p48, %p49
    %p52 = scmp.ne.s32.totalorder %s35, %s51
    %p53 = scmp.eq.s32.totalorder %s15, 0
    %p54 = por %p52, %p53
    %s55 = ssub.s32 %s17, %s24
    %p56 = scmp.eq.s32.totalorder %s55, 0
    %s58 = sadd.s32 %s57, 1
    %s59 = scalar_select %p56, %s57, %s58
    %p62 = pneg %p56
    %p63 = scmp.eq.s32.totalorder %s9, 3
    %p64 = por %p62, %p63
    %p65 = scmp.ne.s32.totalorder %s57, %s60
    %p66 = scmp.eq.s32.totalorder %s9, 0
    %p67 = por %p65, %p66
    %p68 = scmp.ne.s32.totalorder %s57, %s60
    %p69 = scmp.eq.s32.totalorder %s14, 3
    %p70 = por %p68, %p69
    %p71 = scmp.ne.s32.totalorder %s60, %s61
    %p72 = scmp.eq.s32.totalorder %s14, 0
    %p73 = por %p71, %p72
    %p74 = scmp.ne.s32.totalorder %s60, %s61
    %p75 = scmp.eq.s32.totalorder %s15, 3
    %p76 = por %p74, %p75
    %p78 = scmp.ne.s32.totalorder %s61, %s77
    %p79 = scmp.eq.s32.totalorder %s15, 0
    %p80 = por %p78, %p79
    %s81 = ssub.s32 %s17, %s24
    %p82 = scmp.eq.s32.totalorder %s81, 0
    %s84 = sadd.s32 %s83, 1
    %s85 = scalar_select %p82, %s83, %s84
    %p88 = pneg %p82
    %p89 = scmp.eq.s32.totalorder %s9, 3
    %p90 = por %p88, %p89
    %p91 = scmp.ne.s32.totalorder %s83, %s86
    %p92 = scmp.eq.s32.totalorder %s9, 0
    %p93 = por %p91, %p92
    %p94 = scmp.ne.s32.totalorder %s83, %s86
    %p95 = scmp.eq.s32.totalorder %s14, 3
    %p96 = por %p94, %p95
    %p97 = scmp.ne.s32.totalorder %s86, %s87
    %p98 = scmp.eq.s32.totalorder %s14, 0
    %p99 = por %p97, %p98
    %p100 = scmp.ne.s32.totalorder %s86, %s87
    %p101 = scmp.eq.s32.totalorder %s15, 3
    %p102 = por %p100, %p101
    %p104 = scmp.ne.s32.totalorder %s87, %s103
    %p105 = scmp.eq.s32.totalorder %s15, 0
    %p106 = por %p104, %p105
    %s107 = ssub.s32 %s16, %s28
    %s108 = ssub.s32 %s17, %s24
    %s109 = sor.u32 %s107, %s108
    %p110 = scmp.eq.s32.totalorder %s109, 0
    %s112 = sadd.s32 %s111, 1
    %s113 = scalar_select %p110, %s111, %s112
    %p116 = pneg %p110
    %p117 = scmp.eq.s32.totalorder %s9, 3
    %p118 = por %p116, %p117
    %p119 = scmp.ne.s32.totalorder %s111, %s114
    %p120 = scmp.eq.s32.totalorder %s9, 0
    %p121 = por %p119, %p120
    %p122 = scmp.ne.s32.totalorder %s111, %s114
    %p123 = scmp.eq.s32.totalorder %s14, 3
    %p124 = por %p122, %p123
    %p125 = scmp.ne.s32.totalorder %s114, %s115
    %p126 = scmp.eq.s32.totalorder %s14, 0
    %p127 = por %p125, %p126
    %p128 = scmp.ne.s32.totalorder %s114, %s115
    %p129 = scmp.eq.s32.totalorder %s15, 3
    %p130 = por %p128, %p129
    %p132 = scmp.ne.s32.totalorder %s115, %s131
    %p133 = scmp.eq.s32.totalorder %s15, 0
    %p134 = por %p132, %p133
    %p135 = scmp.le.s32.totalorder 1, %s9
    %p136 = scmp.lt.s32.totalorder %s9, 5
    %p137 = pnand %p135, %p136
    %p138 = pneg %p137
    // Predicated region
    $region9: #{tpu_custom_call.1} parent=5 // pred_check
      _
    $region10: #{tpu_custom_call.1} parent=5 // pred_check_branch
      %140 = sbr.rel (%p137) target = $region12
    $region11: #{tpu_custom_call.1} parent=5 // pred_region
      %s141 = ssub.s32 %s9, 1
      // Predicated region
      $region13: #{tpu_custom_call.1} parent=11 // pred_check
        %p142 = pneg %p73
      $region14: #{tpu_custom_call.1} parent=11 // pred_check_branch
        %144 = sbr.rel (%p142) target = $region16
      $region15: #{tpu_custom_call.1} parent=11 // pred_region
        %p145 = scmp.lt.s32.totalorder %s19, 0
        %s146 = scalar_select %p145, %s19, 0
        %s147 = smul.addr %s146, 4
        %s148 = scalar_lea.vmem %s1, %s147
      $region16: #{tpu_custom_call.1} parent=11 // pred_fallthru
        _
      // Predicated region
      $region17: #{tpu_custom_call.1} parent=11 // pred_check
        %p149 = pneg %p99
      $region18: #{tpu_custom_call.1} parent=11 // pred_check_branch
        %151 = sbr.rel (%p149) target = $region20
      $region19: #{tpu_custom_call.1} parent=11 // pred_region
        %p152 = scmp.lt.s32.totalorder %s19, 0
        %s153 = scalar_select %p152, %s19, 0
        %s154 = scalar_lea.vmem %s2, %s153
      $region20: #{tpu_custom_call.1} parent=11 // pred_fallthru
        _
    $region12: #{tpu_custom_call.1} parent=5 // pred_fallthru
      _
    %p155 = scmp.lt.s32.totalorder %s9, 4
    // Predicated region
    $region21: #{tpu_custom_call.1} parent=5 // pred_check
      %p156 = pneg %p155
    $region22: #{tpu_custom_call.1} parent=5 // pred_check_branch
      %158 = sbr.rel (%p156) target = $region24
    $region23: #{tpu_custom_call.1} parent=5 // pred_region
      // Predicated region
      $region25: #{tpu_custom_call.1} parent=23 // pred_check
        %p159 = pneg %p41
      $region26: #{tpu_custom_call.1} parent=23 // pred_check_branch
        %161 = sbr.rel (%p159) target = $region28
      $region27: #{tpu_custom_call.1} parent=23 // pred_region
        %s162 = smul.u32 64, %s16
        %p163 = scmp.lt.s32.totalorder %s162, 255
        %s164 = scalar_select %p163, %s162, 255
        %s165 = smul.addr %s164, 4
        %s166 = scalar_lea.vmem %s0, %s165
        %s167 = smul.u32 64, %s16
      $region28: #{tpu_custom_call.1} parent=23 // pred_fallthru
        _
    $region24: #{tpu_custom_call.1} parent=5 // pred_fallthru
      _
    %p168 = scmp.le.s32.totalorder 1, %s9
    %p169 = scmp.lt.s32.totalorder %s9, 5
    %p170 = pnand %p168, %p169
    %p171 = pneg %p170
    // Predicated region
    $region29: #{tpu_custom_call.1} parent=5 // pred_check
      _
    $region30: #{tpu_custom_call.1} parent=5 // pred_check_branch
      %173 = sbr.rel (%p170) target = $region32
    $region31: #{tpu_custom_call.1} parent=5 // pred_region
      %s174 = ssub.s32 %s9, 1
      %s175 = smul.u32 64, %s18
      %p176 = scmp.lt.s32.totalorder %s175, 255
      %s177 = scalar_select %p176, %s175, 255
      %s178 = smul.addr %s177, 4
      %s179 = scalar_lea.vmem %s0, %s178
      %p180 = pneg %p47
      %p181 = pneg %p44
      %p182 = scmp.lt.s32.totalorder %s19, 0
      %s183 = scalar_select %p182, %s19, 0
      %s184 = smul.addr %s183, 4
      %s185 = scalar_lea.vmem %s1, %s184
      %p186 = pneg %p73
      %p187 = pneg %p70
      %p188 = scmp.lt.s32.totalorder %s19, 0
      %s189 = scalar_select %p188, %s19, 0
      %s190 = scalar_lea.vmem %s2, %s189
      %p191 = pneg %p99
      %p192 = pneg %p96
      %p193 = pneg %p127
      %p194 = pneg %p124
      %s195 = smul.u32 64, %s18
      %p196 = scmp.lt.s32.totalorder %s195, 255
      %s197 = scalar_select %p196, %s195, 255
      %p198 = scmp.lt.s32.totalorder %s19, 0
      %s199 = scalar_select %p198, %s19, 0
      %s200 = sadd.s32 %s199, %s197
      %s201 = smul.addr %s200, 4
      %s202 = scalar_lea.vmem %s3, %s201
      %s203 = smul.u32 64, %s18
      %p204 = scmp.lt.s32.totalorder %s203, 255
      %s205 = scalar_select %p204, %s203, 255
      %s206 = smul.addr %s205, 4
      %s207 = scalar_lea.vmem %s0, %s206
      %s208 = smul.u32 64, %s18
      %p209 = scmp.lt.s32.totalorder %s19, 0
      %s210 = scalar_select %p209, %s19, 0
      %s211 = smul.addr %s210, 4
      %s212 = scalar_lea.vmem %s1, %s211
      %p213 = scmp.lt.s32.totalorder %s19, 0
      %s214 = scalar_select %p213, %s19, 0
      %s215 = scalar_lea.vmem %s2, %s214
      %s216 = smul.u32 64, %s18
      %p217 = scmp.lt.s32.totalorder %s216, 255
      %s218 = scalar_select %p217, %s216, 255
      %p219 = scmp.lt.s32.totalorder %s19, 0
      %s220 = scalar_select %p219, %s19, 0
      %s221 = sadd.s32 %s220, %s218
      %s222 = smul.addr %s221, 4
      %s223 = scalar_lea.vmem %s3, %s222
      %s224 = smul.u32 64, %s18
      %v226 = vld [vmem:[%s207] sm:$0xf]
      %v227 = vld [vmem:[%s207 + $0x4] sm:$0xf]
      %v228 = vld [vmem:[%s207 + $0x8] sm:$0xf]
      %v229 = vld [vmem:[%s207 + $0xc] sm:$0xf]
      %v230 = vld [vmem:[%s207 + $0x10] sm:$0xf]
      %v231 = vld [vmem:[%s207 + $0x14] sm:$0xf]
      %v232 = vld [vmem:[%s207 + $0x18] sm:$0xf]
      %v233 = vld [vmem:[%s207 + $0x1c] sm:$0xf]
      %v234 = vld [vmem:[%s207 + $0x20] sm:$0xf]
      %v235 = vld [vmem:[%s207 + $0x24] sm:$0xf]
      %v236 = vld [vmem:[%s207 + $0x28] sm:$0xf]
      %v237 = vld [vmem:[%s207 + $0x2c] sm:$0xf]
      %v238 = vld [vmem:[%s207 + $0x30] sm:$0xf]
      %v239 = vld [vmem:[%s207 + $0x34] sm:$0xf]
      %v240 = vld [vmem:[%s207 + $0x38] sm:$0xf]
      %v241 = vld [vmem:[%s207 + $0x3c] sm:$0xf]
      %v242 = vld [vmem:[%s207 + $0x40] sm:$0xf]
      %v243 = vld [vmem:[%s207 + $0x44] sm:$0xf]
      %v244 = vld [vmem:[%s207 + $0x48] sm:$0xf]
      %v245 = vld [vmem:[%s207 + $0x4c] sm:$0xf]
      %v246 = vld [vmem:[%s207 + $0x50] sm:$0xf]
      %v247 = vld [vmem:[%s207 + $0x54] sm:$0xf]
      %v248 = vld [vmem:[%s207 + $0x58] sm:$0xf]
      %v249 = vld [vmem:[%s207 + $0x5c] sm:$0xf]
      %v250 = vld [vmem:[%s207 + $0x60] sm:$0xf]
      %v251 = vld [vmem:[%s207 + $0x64] sm:$0xf]
      %v252 = vld [vmem:[%s207 + $0x68] sm:$0xf]
      %v253 = vld [vmem:[%s207 + $0x6c] sm:$0xf]
      %v254 = vld [vmem:[%s207 + $0x70] sm:$0xf]
      %v255 = vld [vmem:[%s207 + $0x74] sm:$0xf]
      %v256 = vld [vmem:[%s207 + $0x78] sm:$0xf]
      %v257 = vld [vmem:[%s207 + $0x7c] sm:$0xf]
      %v258 = vld [vmem:[%s207 + $0x80] sm:$0xf]
      %v259 = vld [vmem:[%s207 + $0x84] sm:$0xf]
      %v260 = vld [vmem:[%s207 + $0x88] sm:$0xf]
      %v261 = vld [vmem:[%s207 + $0x8c] sm:$0xf]
      %v262 = vld [vmem:[%s207 + $0x90] sm:$0xf]
      %v263 = vld [vmem:[%s207 + $0x94] sm:$0xf]
      %v264 = vld [vmem:[%s207 + $0x98] sm:$0xf]
      %v265 = vld [vmem:[%s207 + $0x9c] sm:$0xf]
      %v266 = vld [vmem:[%s207 + $0xa0] sm:$0xf]
      %v267 = vld [vmem:[%s207 + $0xa4] sm:$0xf]
      %v268 = vld [vmem:[%s207 + $0xa8] sm:$0xf]
      %v269 = vld [vmem:[%s207 + $0xac] sm:$0xf]
      %v270 = vld [vmem:[%s207 + $0xb0] sm:$0xf]
      %v271 = vld [vmem:[%s207 + $0xb4] sm:$0xf]
      %v272 = vld [vmem:[%s207 + $0xb8] sm:$0xf]
      %v273 = vld [vmem:[%s207 + $0xbc] sm:$0xf]
      %v274 = vld [vmem:[%s207 + $0xc0] sm:$0xf]
      %v275 = vld [vmem:[%s207 + $0xc4] sm:$0xf]
      %v276 = vld [vmem:[%s207 + $0xc8] sm:$0xf]
      %v277 = vld [vmem:[%s207 + $0xcc] sm:$0xf]
      %v278 = vld [vmem:[%s207 + $0xd0] sm:$0xf]
      %v279 = vld [vmem:[%s207 + $0xd4] sm:$0xf]
      %v280 = vld [vmem:[%s207 + $0xd8] sm:$0xf]
      %v281 = vld [vmem:[%s207 + $0xdc] sm:$0xf]
      %v282 = vld [vmem:[%s207 + $0xe0] sm:$0xf]
      %v283 = vld [vmem:[%s207 + $0xe4] sm:$0xf]
      %v284 = vld [vmem:[%s207 + $0xe8] sm:$0xf]
      %v285 = vld [vmem:[%s207 + $0xec] sm:$0xf]
      %v286 = vld [vmem:[%s207 + $0xf0] sm:$0xf]
      %v287 = vld [vmem:[%s207 + $0xf4] sm:$0xf]
      %v288 = vld [vmem:[%s207 + $0xf8] sm:$0xf]
      %v289 = vld [vmem:[%s207 + $0xfc] sm:$0xf]
      %v290 = vld [vmem:[%s212] sm:$0xf]
      %v291 = vld [vmem:[%s212 + $0x4] sm:$0xf]
      %v292 = vld [vmem:[%s212 + $0x8] sm:$0xf]
      %v293 = vld [vmem:[%s212 + $0xc] sm:$0x3]
      %v294 = vld [vmem:[%s215] sm:$0x1]
      %v296 = vlaneseq
      %v297 = vshrl.u32 %v296, 7
      %v298 = vsub.s32 0, %v297
      %v299 = vrot.slane %v294, %v298
      %v365 = vunpack.c.l.b16 %v226
      %v366 = vunpack.c.l.b16 %v227
      %v367 = vunpack.c.l.b16 %v228
      %v368 = vunpack.c.l.b16 %v229
      %v369 = vunpack.c.l.b16 %v230
      %v370 = vunpack.c.l.b16 %v231
      %v371 = vunpack.c.l.b16 %v232
      %v372 = vunpack.c.l.b16 %v233
      %v373 = vunpack.c.l.b16 %v234
      %v374 = vunpack.c.l.b16 %v235
      %v375 = vunpack.c.l.b16 %v236
      %v376 = vunpack.c.l.b16 %v237
      %v377 = vunpack.c.l.b16 %v238
      %v378 = vunpack.c.l.b16 %v239
      %v379 = vunpack.c.l.b16 %v240
      %v380 = vunpack.c.l.b16 %v241
      %v381 = vunpack.c.l.b16 %v242
      %v382 = vunpack.c.l.b16 %v243
      %v383 = vunpack.c.l.b16 %v244
      %v384 = vunpack.c.l.b16 %v245
      %v385 = vunpack.c.l.b16 %v246
      %v386 = vunpack.c.l.b16 %v247
      %v387 = vunpack.c.l.b16 %v248
      %v388 = vunpack.c.l.b16 %v249
      %v389 = vunpack.c.l.b16 %v250
      %v390 = vunpack.c.l.b16 %v251
      %v391 = vunpack.c.l.b16 %v252
      %v392 = vunpack.c.l.b16 %v253
      %v393 = vunpack.c.l.b16 %v254
      %v394 = vunpack.c.l.b16 %v255
      %v395 = vunpack.c.l.b16 %v256
      %v396 = vunpack.c.l.b16 %v257
      %v397 = vunpack.c.l.b16 %v258
      %v398 = vunpack.c.l.b16 %v259
      %v399 = vunpack.c.l.b16 %v260
      %v400 = vunpack.c.l.b16 %v261
      %v401 = vunpack.c.l.b16 %v262
      %v402 = vunpack.c.l.b16 %v263
      %v403 = vunpack.c.l.b16 %v264
      %v404 = vunpack.c.l.b16 %v265
      %v405 = vunpack.c.l.b16 %v266
      %v406 = vunpack.c.l.b16 %v267
      %v407 = vunpack.c.l.b16 %v268
      %v408 = vunpack.c.l.b16 %v269
      %v409 = vunpack.c.l.b16 %v270
      %v410 = vunpack.c.l.b16 %v271
      %v411 = vunpack.c.l.b16 %v272
      %v412 = vunpack.c.l.b16 %v273
      %v413 = vunpack.c.l.b16 %v274
      %v414 = vunpack.c.l.b16 %v275
      %v415 = vunpack.c.l.b16 %v276
      %v416 = vunpack.c.l.b16 %v277
      %v417 = vunpack.c.l.b16 %v278
      %v418 = vunpack.c.l.b16 %v279
      %v419 = vunpack.c.l.b16 %v280
      %v420 = vunpack.c.l.b16 %v281
      %v421 = vunpack.c.l.b16 %v282
      %v422 = vunpack.c.l.b16 %v283
      %v423 = vunpack.c.l.b16 %v284
      %v424 = vunpack.c.l.b16 %v285
      %v425 = vunpack.c.l.b16 %v286
      %v426 = vunpack.c.l.b16 %v287
      %v427 = vunpack.c.l.b16 %v288
      %v428 = vunpack.c.l.b16 %v289
      %v429 = vpack.c.b16 %v366, %v365
      %v430 = vpack.c.b16 %v368, %v367
      %v431 = vpack.c.b16 %v370, %v369
      %v432 = vpack.c.b16 %v372, %v371
      %v433 = vpack.c.b16 %v374, %v373
      %v434 = vpack.c.b16 %v376, %v375
      %v435 = vpack.c.b16 %v378, %v377
      %v436 = vpack.c.b16 %v380, %v379
      %v437 = vpack.c.b16 %v382, %v381
      %v438 = vpack.c.b16 %v384, %v383
      %v439 = vpack.c.b16 %v386, %v385
      %v440 = vpack.c.b16 %v388, %v387
      %v441 = vpack.c.b16 %v390, %v389
      %v442 = vpack.c.b16 %v392, %v391
      %v443 = vpack.c.b16 %v394, %v393
      %v444 = vpack.c.b16 %v396, %v395
      %v445 = vpack.c.b16 %v398, %v397
      %v446 = vpack.c.b16 %v400, %v399
      %v447 = vpack.c.b16 %v402, %v401
      %v448 = vpack.c.b16 %v404, %v403
      %v449 = vpack.c.b16 %v406, %v405
      %v450 = vpack.c.b16 %v408, %v407
      %v451 = vpack.c.b16 %v410, %v409
      %v452 = vpack.c.b16 %v412, %v411
      %v453 = vpack.c.b16 %v414, %v413
      %v454 = vpack.c.b16 %v416, %v415
      %v455 = vpack.c.b16 %v418, %v417
      %v456 = vpack.c.b16 %v420, %v419
      %v457 = vpack.c.b16 %v422, %v421
      %v458 = vpack.c.b16 %v424, %v423
      %v459 = vpack.c.b16 %v426, %v425
      %v460 = vpack.c.b16 %v428, %v427
      %v465 = vunpack.c.l.b16 %v290
      %v466 = vunpack.c.l.b16 %v291
      %v467 = vunpack.c.l.b16 %v292
      %v468 = vunpack.c.l.b16 %v293
      %v469 = vpack.c.b16 %v466, %v465
      %v470 = vpack.c.b16 %v468, %v467
      %vm472 = vcmask 220160
      %v474 = vsel %vm472, %v429, 0
      %v477 = vsel %vm472, %v430, 0
      %v480 = vsel %vm472, %v431, 0
      %v483 = vsel %vm472, %v432, 0
      %v486 = vsel %vm472, %v433, 0
      %v489 = vsel %vm472, %v434, 0
      %v492 = vsel %vm472, %v435, 0
      %v495 = vsel %vm472, %v436, 0
      %v498 = vsel %vm472, %v437, 0
      %v501 = vsel %vm472, %v438, 0
      %v504 = vsel %vm472, %v439, 0
      %v507 = vsel %vm472, %v440, 0
      %v510 = vsel %vm472, %v441, 0
      %v513 = vsel %vm472, %v442, 0
      %v516 = vsel %vm472, %v443, 0
      %v519 = vsel %vm472, %v444, 0
      %v522 = vsel %vm472, %v445, 0
      %v525 = vsel %vm472, %v446, 0
      %v528 = vsel %vm472, %v447, 0
      %v531 = vsel %vm472, %v448, 0
      %v534 = vsel %vm472, %v449, 0
      %v537 = vsel %vm472, %v450, 0
      %v540 = vsel %vm472, %v451, 0
      %v543 = vsel %vm472, %v452, 0
      %v546 = vsel %vm472, %v453, 0
      %v549 = vsel %vm472, %v454, 0
      %v552 = vsel %vm472, %v455, 0
      %v555 = vsel %vm472, %v456, 0
      %v558 = vsel %vm472, %v457, 0
      %v561 = vsel %vm472, %v458, 0
      %v564 = vsel %vm472, %v459, 0
      %v567 = vsel %vm472, %v460, 0
      %vm569 = vcmask 1044480
      %vm570 = vcmask 1045504
      %v571 = vsel %vm569, 4294967295, 65535
      %v572 = vsel %vm570, %v571, 0
      %v574 = vand.u32 %v470, %v572
      %576 = vmatprep.subr.bf16.mxu0 0
      %577 = vmatpush1.bf16.msra.mxu0 %v469
      %578 = vmatprep.subr.bf16.mxu0 0
      %579 = vmatpush1.bf16.msra.mxu0 %v574
      %580 = vmatprep.subr.bf16.mxu0 0
      %581 = vmatpush1.bf16.msra.mxu0 0
      %582 = vmatprep.subr.bf16.mxu0 0
      %583 = vmatpush1.bf16.msra.mxu0 0
      %584 = vmatprep.subr.bf16.mxu0 0
      %585 = vmatpush1.bf16.msra.mxu0 0
      %586 = vmatprep.subr.bf16.mxu0 0
      %587 = vmatpush1.bf16.msra.mxu0 0
      %588 = vmatprep.subr.bf16.mxu0 0
      %589 = vmatpush1.bf16.msra.mxu0 0
      %590 = vmatprep.subr.bf16.mxu0 0
      %591 = vmatpush1.bf16.msra.mxu0 0
      %592 = vmatprep.subr.bf16.mxu0 0
      %593 = vmatpush1.bf16.msra.mxu0 0
      %594 = vmatprep.subr.bf16.mxu0 0
      %595 = vmatpush1.bf16.msra.mxu0 0
      %596 = vmatprep.subr.bf16.mxu0 0
      %597 = vmatpush1.bf16.msra.mxu0 0
      %598 = vmatprep.subr.bf16.mxu0 0
      %599 = vmatpush1.bf16.msra.mxu0 0
      %600 = vmatprep.subr.bf16.mxu0 0
      %601 = vmatpush1.bf16.msra.mxu0 0
      %602 = vmatprep.subr.bf16.mxu0 0
      %603 = vmatpush1.bf16.msra.mxu0 0
      %604 = vmatprep.subr.bf16.mxu0 0
      %605 = vmatpush1.bf16.msra.mxu0 0
      %606 = vmatprep.subr.bf16.mxu0 0
      %607 = vmatpush1.bf16.msra.mxu0 0
      %608 = vmatprep.mubr.bf16.mxu0 0
      %609 = vmatmul.mubr.bf16.gmra.mrb[0].mxu0 %v474
      %v610 = vpop.f32.mrb[0].mxu0
      %v611 = vadd.f32 %v299, %v610
      %v612 = vpop.f32.mrb[0].mxu0
      %v613 = vpop.f32.mrb[0].mxu0
      %v614 = vadd.f32 %v299, %v613
      %v615 = vpop.f32.mrb[0].mxu0
      %616 = vmatprep.mubr.bf16.mxu0 0
      %617 = vmatmul.mubr.bf16.gmra.mrb[0].mxu0 %v477
      %v618 = vpop.f32.mrb[0].mxu0
      %v619 = vadd.f32 %v299, %v618
      %v620 = vpop.f32.mrb[0].mxu0
      %v621 = vpop.f32.mrb[0].mxu0
      %v622 = vadd.f32 %v299, %v621
      %v623 = vpop.f32.mrb[0].mxu0
      %624 = vmatprep.mubr.bf16.mxu0 0
      %625 = vmatmul.mubr.bf16.gmra.mrb[0].mxu0 %v480
      %v626 = vpop.f32.mrb[0].mxu0
      %v627 = vadd.f32 %v299, %v626
      %v628 = vpop.f32.mrb[0].mxu0
      %v629 = vpop.f32.mrb[0].mxu0
      %v630 = vadd.f32 %v299, %v629
      %v631 = vpop.f32.mrb[0].mxu0
      %632 = vmatprep.mubr.bf16.mxu0 0
      %633 = vmatmul.mubr.bf16.gmra.mrb[0].mxu0 %v483
      %v634 = vpop.f32.mrb[0].mxu0
      %v635 = vadd.f32 %v299, %v634
      %v636 = vpop.f32.mrb[0].mxu0
      %v637 = vpop.f32.mrb[0].mxu0
      %v638 = vadd.f32 %v299, %v637
      %v639 = vpop.f32.mrb[0].mxu0
      %640 = vmatprep.mubr.bf16.mxu0 0
      %641 = vmatmul.mubr.bf16.gmra.mrb[0].mxu0 %v486
      %v642 = vpop.f32.mrb[0].mxu0
      %v643 = vadd.f32 %v299, %v642
      %v644 = vpop.f32.mrb[0].mxu0
      %v645 = vpop.f32.mrb[0].mxu0
      %v646 = vadd.f32 %v299, %v645
      %v647 = vpop.f32.mrb[0].mxu0
      %648 = vmatprep.mubr.bf16.mxu0 0
      %649 = vmatmul.mubr.bf16.gmra.mrb[0].mxu0 %v489
      %v650 = vpop.f32.mrb[0].mxu0
      %v651 = vadd.f32 %v299, %v650
      %v652 = vpop.f32.mrb[0].mxu0
      %v653 = vpop.f32.mrb[0].mxu0
      %v654 = vadd.f32 %v299, %v653
      %v655 = vpop.f32.mrb[0].mxu0
      %656 = vmatprep.mubr.bf16.mxu0 0
      %657 = vmatmul.mubr.bf16.gmra.mrb[0].mxu0 %v492
      %v658 = vpop.f32.mrb[0].mxu0
      %v659 = vadd.f32 %v299, %v658
      %v660 = vpop.f32.mrb[0].mxu0
      %v661 = vpop.f32.mrb[0].mxu0
      %v662 = vadd.f32 %v299, %v661
      %v663 = vpop.f32.mrb[0].mxu0
      %664 = vmatprep.mubr.bf16.mxu0 0
      %665 = vmatmul.mubr.bf16.gmra.mrb[0].mxu0 %v495
      %v666 = vpop.f32.mrb[0].mxu0
      %v667 = vadd.f32 %v299, %v666
      %v668 = vpop.f32.mrb[0].mxu0
      %v669 = vpop.f32.mrb[0].mxu0
      %v670 = vadd.f32 %v299, %v669
      %v671 = vpop.f32.mrb[0].mxu0
      %672 = vmatprep.mubr.bf16.mxu0 0
      %673 = vmatmul.mubr.bf16.gmra.mrb[0].mxu0 %v498
      %v674 = vpop.f32.mrb[0].mxu0
      %v675 = vadd.f32 %v299, %v674
      %v676 = vpop.f32.mrb[0].mxu0
      %v677 = vpop.f32.mrb[0].mxu0
      %v678 = vadd.f32 %v299, %v677
      %v679 = vpop.f32.mrb[0].mxu0
      %680 = vmatprep.mubr.bf16.mxu0 0
      %681 = vmatmul.mubr.bf16.gmra.mrb[0].mxu0 %v501
      %v682 = vpop.f32.mrb[0].mxu0
      %v683 = vadd.f32 %v299, %v682
      %v684 = vpop.f32.mrb[0].mxu0
      %v685 = vpop.f32.mrb[0].mxu0
      %v686 = vadd.f32 %v299, %v685
      %v687 = vpop.f32.mrb[0].mxu0
      %688 = vmatprep.mubr.bf16.mxu0 0
      %689 = vmatmul.mubr.bf16.gmra.mrb[0].mxu0 %v504
      %v690 = vpop.f32.mrb[0].mxu0
      %v691 = vadd.f32 %v299, %v690
      %v692 = vpop.f32.mrb[0].mxu0
      %v693 = vpop.f32.mrb[0].mxu0
      %v694 = vadd.f32 %v299, %v693
      %v695 = vpop.f32.mrb[0].mxu0
      %696 = vmatprep.mubr.bf16.mxu0 0
      %697 = vmatmul.mubr.bf16.gmra.mrb[0].mxu0 %v507
      %v698 = vpop.f32.mrb[0].mxu0
      %v699 = vadd.f32 %v299, %v698
      %v700 = vpop.f32.mrb[0].mxu0
      %v701 = vpop.f32.mrb[0].mxu0
      %v702 = vadd.f32 %v299, %v701
      %v703 = vpop.f32.mrb[0].mxu0
      %704 = vmatprep.mubr.bf16.mxu0 0
      %705 = vmatmul.mubr.bf16.gmra.mrb[0].mxu0 %v510
      %v706 = vpop.f32.mrb[0].mxu0
      %v707 = vadd.f32 %v299, %v706
      %v708 = vpop.f32.mrb[0].mxu0
      %v709 = vpop.f32.mrb[0].mxu0
      %v710 = vadd.f32 %v299, %v709
      %v711 = vpop.f32.mrb[0].mxu0
      %712 = vmatprep.mubr.bf16.mxu0 0
      %713 = vmatmul.mubr.bf16.gmra.mrb[0].mxu0 %v513
      %v714 = vpop.f32.mrb[0].mxu0
      %v715 = vadd.f32 %v299, %v714
      %v716 = vpop.f32.mrb[0].mxu0
      %v717 = vpop.f32.mrb[0].mxu0
      %v718 = vadd.f32 %v299, %v717
      %v719 = vpop.f32.mrb[0].mxu0
      %720 = vmatprep.mubr.bf16.mxu0 0
      %721 = vmatmul.mubr.bf16.gmra.mrb[0].mxu0 %v516
      %v722 = vpop.f32.mrb[0].mxu0
      %v723 = vadd.f32 %v299, %v722
      %v724 = vpop.f32.mrb[0].mxu0
      %v725 = vpop.f32.mrb[0].mxu0
      %v726 = vadd.f32 %v299, %v725
      %v727 = vpop.f32.mrb[0].mxu0
      %728 = vmatprep.mubr.bf16.mxu0 0
      %729 = vmatmul.mubr.bf16.gmra.mrb[0].mxu0 %v519
      %v730 = vpop.f32.mrb[0].mxu0
      %v731 = vadd.f32 %v299, %v730
      %v732 = vpop.f32.mrb[0].mxu0
      %v733 = vpop.f32.mrb[0].mxu0
      %v734 = vadd.f32 %v299, %v733
      %v735 = vpop.f32.mrb[0].mxu0
      %736 = vmatprep.mubr.bf16.mxu0 0
      %737 = vmatmul.mubr.bf16.gmra.mrb[0].mxu0 %v522
      %v738 = vpop.f32.mrb[0].mxu0
      %v739 = vadd.f32 %v299, %v738
      %v740 = vpop.f32.mrb[0].mxu0
      %v741 = vpop.f32.mrb[0].mxu0
      %v742 = vadd.f32 %v299, %v741
      %v743 = vpop.f32.mrb[0].mxu0
      %744 = vmatprep.mubr.bf16.mxu0 0
      %745 = vmatmul.mubr.bf16.gmra.mrb[0].mxu0 %v525
      %v746 = vpop.f32.mrb[0].mxu0
      %v747 = vadd.f32 %v299, %v746
      %v748 = vpop.f32.mrb[0].mxu0
      %v749 = vpop.f32.mrb[0].mxu0
      %v750 = vadd.f32 %v299, %v749
      %v751 = vpop.f32.mrb[0].mxu0
      %752 = vmatprep.mubr.bf16.mxu0 0
      %753 = vmatmul.mubr.bf16.gmra.mrb[0].mxu0 %v528
      %v754 = vpop.f32.mrb[0].mxu0
      %v755 = vadd.f32 %v299, %v754
      %v756 = vpop.f32.mrb[0].mxu0
      %v757 = vpop.f32.mrb[0].mxu0
      %v758 = vadd.f32 %v299, %v757
      %v759 = vpop.f32.mrb[0].mxu0
      %760 = vmatprep.mubr.bf16.mxu0 0
      %761 = vmatmul.mubr.bf16.gmra.mrb[0].mxu0 %v531
      %v762 = vpop.f32.mrb[0].mxu0
      %v763 = vadd.f32 %v299, %v762
      %v764 = vpop.f32.mrb[0].mxu0
      %v765 = vpop.f32.mrb[0].mxu0
      %v766 = vadd.f32 %v299, %v765
      %v767 = vpop.f32.mrb[0].mxu0
      %768 = vmatprep.mubr.bf16.mxu0 0
      %769 = vmatmul.mubr.bf16.gmra.mrb[0].mxu0 %v534
      %v770 = vpop.f32.mrb[0].mxu0
      %v771 = vadd.f32 %v299, %v770
      %v772 = vpop.f32.mrb[0].mxu0
      %v773 = vpop.f32.mrb[0].mxu0
      %v774 = vadd.f32 %v299, %v773
      %v775 = vpop.f32.mrb[0].mxu0
      %776 = vmatprep.mubr.bf16.mxu0 0
      %777 = vmatmul.mubr.bf16.gmra.mrb[0].mxu0 %v537
      %v778 = vpop.f32.mrb[0].mxu0
      %v779 = vadd.f32 %v299, %v778
      %v780 = vpop.f32.mrb[0].mxu0
      %v781 = vpop.f32.mrb[0].mxu0
      %v782 = vadd.f32 %v299, %v781
      %v783 = vpop.f32.mrb[0].mxu0
      %784 = vmatprep.mubr.bf16.mxu0 0
      %785 = vmatmul.mubr.bf16.gmra.mrb[0].mxu0 %v540
      %v786 = vpop.f32.mrb[0].mxu0
      %v787 = vadd.f32 %v299, %v786
      %v788 = vpop.f32.mrb[0].mxu0
      %v789 = vpop.f32.mrb[0].mxu0
      %v790 = vadd.f32 %v299, %v789
      %v791 = vpop.f32.mrb[0].mxu0
      %792 = vmatprep.mubr.bf16.mxu0 0
      %793 = vmatmul.mubr.bf16.gmra.mrb[0].mxu0 %v543
      %v794 = vpop.f32.mrb[0].mxu0
      %v795 = vadd.f32 %v299, %v794
      %v796 = vpop.f32.mrb[0].mxu0
      %v797 = vpop.f32.mrb[0].mxu0
      %v798 = vadd.f32 %v299, %v797
      %v799 = vpop.f32.mrb[0].mxu0
      %800 = vmatprep.mubr.bf16.mxu0 0
      %801 = vmatmul.mubr.bf16.gmra.mrb[0].mxu0 %v546
      %v802 = vpop.f32.mrb[0].mxu0
      %v803 = vadd.f32 %v299, %v802
      %v804 = vpop.f32.mrb[0].mxu0
      %v805 = vpop.f32.mrb[0].mxu0
      %v806 = vadd.f32 %v299, %v805
      %v807 = vpop.f32.mrb[0].mxu0
      %808 = vmatprep.mubr.bf16.mxu0 0
      %809 = vmatmul.mubr.bf16.gmra.mrb[0].mxu0 %v549
      %v810 = vpop.f32.mrb[0].mxu0
      %v811 = vadd.f32 %v299, %v810
      %v812 = vpop.f32.mrb[0].mxu0
      %v813 = vpop.f32.mrb[0].mxu0
      %v814 = vadd.f32 %v299, %v813
      %v815 = vpop.f32.mrb[0].mxu0
      %816 = vmatprep.mubr.bf16.mxu0 0
      %817 = vmatmul.mubr.bf16.gmra.mrb[0].mxu0 %v552
      %v818 = vpop.f32.mrb[0].mxu0
      %v819 = vadd.f32 %v299, %v818
      %v820 = vpop.f32.mrb[0].mxu0
      %v821 = vpop.f32.mrb[0].mxu0
      %v822 = vadd.f32 %v299, %v821
      %v823 = vpop.f32.mrb[0].mxu0
      %824 = vmatprep.mubr.bf16.mxu0 0
      %825 = vmatmul.mubr.bf16.gmra.mrb[0].mxu0 %v555
      %v826 = vpop.f32.mrb[0].mxu0
      %v827 = vadd.f32 %v299, %v826
      %v828 = vpop.f32.mrb[0].mxu0
      %v829 = vpop.f32.mrb[0].mxu0
      %v830 = vadd.f32 %v299, %v829
      %v831 = vpop.f32.mrb[0].mxu0
      %832 = vmatprep.mubr.bf16.mxu0 0
      %833 = vmatmul.mubr.bf16.gmra.mrb[0].mxu0 %v558
      %v834 = vpop.f32.mrb[0].mxu0
      %v835 = vadd.f32 %v299, %v834
      %v836 = vpop.f32.mrb[0].mxu0
      %v837 = vpop.f32.mrb[0].mxu0
      %v838 = vadd.f32 %v299, %v837
      %v839 = vpop.f32.mrb[0].mxu0
      %840 = vmatprep.mubr.bf16.mxu0 0
      %841 = vmatmul.mubr.bf16.gmra.mrb[0].mxu0 %v561
      %v842 = vpop.f32.mrb[0].mxu0
      %v843 = vadd.f32 %v299, %v842
      %v844 = vpop.f32.mrb[0].mxu0
      %v845 = vpop.f32.mrb[0].mxu0
      %v846 = vadd.f32 %v299, %v845
      %v847 = vpop.f32.mrb[0].mxu0
      %848 = vmatprep.mubr.bf16.mxu0 0
      %849 = vmatmul.mubr.bf16.gmra.mrb[0].mxu0 %v564
      %v850 = vpop.f32.mrb[0].mxu0
      %v851 = vadd.f32 %v299, %v850
      %v852 = vpop.f32.mrb[0].mxu0
      %v853 = vpop.f32.mrb[0].mxu0
      %v854 = vadd.f32 %v299, %v853
      %v855 = vpop.f32.mrb[0].mxu0
      %856 = vmatprep.mubr.bf16.mxu0 0
      %857 = vmatmul.mubr.bf16.gmra.mrb[0].mxu0 %v567
      %v858 = vpop.f32.mrb[0].mxu0
      %v859 = vadd.f32 %v299, %v858
      %v860 = vpop.f32.mrb[0].mxu0
      %v861 = vpop.f32.mrb[0].mxu0
      %v862 = vadd.f32 %v299, %v861
      %v863 = vpop.f32.mrb[0].mxu0
      %864 = vdwg.mxu0
      %v865 = vxor.u32 %v611, 2147483648
      %v866 = vxor.u32 %v614, 2147483648
      %v867 = vxor.u32 %v619, 2147483648
      %v868 = vxor.u32 %v622, 2147483648
      %v869 = vxor.u32 %v627, 2147483648
      %v870 = vxor.u32 %v630, 2147483648
      %v871 = vxor.u32 %v635, 2147483648
      %v872 = vxor.u32 %v638, 2147483648
      %v873 = vxor.u32 %v643, 2147483648
      %v874 = vxor.u32 %v646, 2147483648
      %v875 = vxor.u32 %v651, 2147483648
      %v876 = vxor.u32 %v654, 2147483648
      %v877 = vxor.u32 %v659, 2147483648
      %v878 = vxor.u32 %v662, 2147483648
      %v879 = vxor.u32 %v667, 2147483648
      %v880 = vxor.u32 %v670, 2147483648
      %v881 = vxor.u32 %v675, 2147483648
      %v882 = vxor.u32 %v678, 2147483648
      %v883 = vxor.u32 %v683, 2147483648
      %v884 = vxor.u32 %v686, 2147483648
      %v885 = vxor.u32 %v691, 2147483648
      %v886 = vxor.u32 %v694, 2147483648
      %v887 = vxor.u32 %v699, 2147483648
      %v888 = vxor.u32 %v702, 2147483648
      %v889 = vxor.u32 %v707, 2147483648
      %v890 = vxor.u32 %v710, 2147483648
      %v891 = vxor.u32 %v715, 2147483648
      %v892 = vxor.u32 %v718, 2147483648
      %v893 = vxor.u32 %v723, 2147483648
      %v894 = vxor.u32 %v726, 2147483648
      %v895 = vxor.u32 %v731, 2147483648
      %v896 = vxor.u32 %v734, 2147483648
      %v897 = vxor.u32 %v739, 2147483648
      %v898 = vxor.u32 %v742, 2147483648
      %v899 = vxor.u32 %v747, 2147483648
      %v900 = vxor.u32 %v750, 2147483648
      %v901 = vxor.u32 %v755, 2147483648
      %v902 = vxor.u32 %v758, 2147483648
      %v903 = vxor.u32 %v763, 2147483648
      %v904 = vxor.u32 %v766, 2147483648
      %v905 = vxor.u32 %v771, 2147483648
      %v906 = vxor.u32 %v774, 2147483648
      %v907 = vxor.u32 %v779, 2147483648
      %v908 = vxor.u32 %v782, 2147483648
      %v909 = vxor.u32 %v787, 2147483648
      %v910 = vxor.u32 %v790, 2147483648
      %v911 = vxor.u32 %v795, 2147483648
      %v912 = vxor.u32 %v798, 2147483648
      %v913 = vxor.u32 %v803, 2147483648
      %v914 = vxor.u32 %v806, 2147483648
      %v915 = vxor.u32 %v811, 2147483648
      %v916 = vxor.u32 %v814, 2147483648
      %v917 = vxor.u32 %v819, 2147483648
      %v918 = vxor.u32 %v822, 2147483648
      %v919 = vxor.u32 %v827, 2147483648
      %v920 = vxor.u32 %v830, 2147483648
      %v921 = vxor.u32 %v835, 2147483648
      %v922 = vxor.u32 %v838, 2147483648
      %v923 = vxor.u32 %v843, 2147483648
      %v924 = vxor.u32 %v846, 2147483648
      %v925 = vxor.u32 %v851, 2147483648
      %v926 = vxor.u32 %v854, 2147483648
      %v927 = vxor.u32 %v859, 2147483648
      %v928 = vxor.u32 %v862, 2147483648
      %v929 = vmul.f32 %v865, 1.442695
      %v930 = vpow.pop %v929
      %v931 = vmul.f32 %v866, 1.442695
      %v932 = vpow.pop %v931
      %v933 = vmul.f32 %v867, 1.442695
      %v934 = vpow.pop %v933
      %v935 = vmul.f32 %v868, 1.442695
      %v936 = vpow.pop %v935
      %v937 = vmul.f32 %v869, 1.442695
      %v938 = vpow.pop %v937
      %v939 = vmul.f32 %v870, 1.442695
      %v940 = vpow.pop %v939
      %v941 = vmul.f32 %v871, 1.442695
      %v942 = vpow.pop %v941
      %v943 = vmul.f32 %v872, 1.442695
      %v944 = vpow.pop %v943
      %v945 = vmul.f32 %v873, 1.442695
      %v946 = vpow.pop %v945
      %v947 = vmul.f32 %v874, 1.442695
      %v948 = vpow.pop %v947
      %v949 = vmul.f32 %v875, 1.442695
      %v950 = vpow.pop %v949
      %v951 = vmul.f32 %v876, 1.442695
      %v952 = vpow.pop %v951
      %v953 = vmul.f32 %v877, 1.442695
      %v954 = vpow.pop %v953
      %v955 = vmul.f32 %v878, 1.442695
      %v956 = vpow.pop %v955
      %v957 = vmul.f32 %v879, 1.442695
      %v958 = vpow.pop %v957
      %v959 = vmul.f32 %v880, 1.442695
      %v960 = vpow.pop %v959
      %v961 = vmul.f32 %v881, 1.442695
      %v962 = vpow.pop %v961
      %v963 = vmul.f32 %v882, 1.442695
      %v964 = vpow.pop %v963
      %v965 = vmul.f32 %v883, 1.442695
      %v966 = vpow.pop %v965
      %v967 = vmul.f32 %v884, 1.442695
      %v968 = vpow.pop %v967
      %v969 = vmul.f32 %v885, 1.442695
      %v970 = vpow.pop %v969
      %v971 = vmul.f32 %v886, 1.442695
      %v972 = vpow.pop %v971
      %v973 = vmul.f32 %v887, 1.442695
      %v974 = vpow.pop %v973
      %v975 = vmul.f32 %v888, 1.442695
      %v976 = vpow.pop %v975
      %v977 = vmul.f32 %v889, 1.442695
      %v978 = vpow.pop %v977
      %v979 = vmul.f32 %v890, 1.442695
      %v980 = vpow.pop %v979
      %v981 = vmul.f32 %v891, 1.442695
      %v982 = vpow.pop %v981
      %v983 = vmul.f32 %v892, 1.442695
      %v984 = vpow.pop %v983
      %v985 = vmul.f32 %v893, 1.442695
      %v986 = vpow.pop %v985
      %v987 = vmul.f32 %v894, 1.442695
      %v988 = vpow.pop %v987
      %v989 = vmul.f32 %v895, 1.442695
      %v990 = vpow.pop %v989
      %v991 = vmul.f32 %v896, 1.442695
      %v992 = vpow.pop %v991
      %v993 = vmul.f32 %v897, 1.442695
      %v994 = vpow.pop %v993
      %v995 = vmul.f32 %v898, 1.442695
      %v996 = vpow.pop %v995
      %v997 = vmul.f32 %v899, 1.442695
      %v998 = vpow.pop %v997
      %v999 = vmul.f32 %v900, 1.442695
      %v1000 = vpow.pop %v999
      %v1001 = vmul.f32 %v901, 1.442695
      %v1002 = vpow.pop %v1001
      %v1003 = vmul.f32 %v902, 1.442695
      %v1004 = vpow.pop %v1003
      %v1005 = vmul.f32 %v903, 1.442695
      %v1006 = vpow.pop %v1005
      %v1007 = vmul.f32 %v904, 1.442695
      %v1008 = vpow.pop %v1007
      %v1009 = vmul.f32 %v905, 1.442695
      %v1010 = vpow.pop %v1009
      %v1011 = vmul.f32 %v906, 1.442695
      %v1012 = vpow.pop %v1011
      %v1013 = vmul.f32 %v907, 1.442695
      %v1014 = vpow.pop %v1013
      %v1015 = vmul.f32 %v908, 1.442695
      %v1016 = vpow.pop %v1015
      %v1017 = vmul.f32 %v909, 1.442695
      %v1018 = vpow.pop %v1017
      %v1019 = vmul.f32 %v910, 1.442695
      %v1020 = vpow.pop %v1019
      %v1021 = vmul.f32 %v911, 1.442695
      %v1022 = vpow.pop %v1021
      %v1023 = vmul.f32 %v912, 1.442695
      %v1024 = vpow.pop %v1023
      %v1025 = vmul.f32 %v913, 1.442695
      %v1026 = vpow.pop %v1025
      %v1027 = vmul.f32 %v914, 1.442695
      %v1028 = vpow.pop %v1027
      %v1029 = vmul.f32 %v915, 1.442695
      %v1030 = vpow.pop %v1029
      %v1031 = vmul.f32 %v916, 1.442695
      %v1032 = vpow.pop %v1031
      %v1033 = vmul.f32 %v917, 1.442695
      %v1034 = vpow.pop %v1033
      %v1035 = vmul.f32 %v918, 1.442695
      %v1036 = vpow.pop %v1035
      %v1037 = vmul.f32 %v919, 1.442695
      %v1038 = vpow.pop %v1037
      %v1039 = vmul.f32 %v920, 1.442695
      %v1040 = vpow.pop %v1039
      %v1041 = vmul.f32 %v921, 1.442695
      %v1042 = vpow.pop %v1041
      %v1043 = vmul.f32 %v922, 1.442695
      %v1044 = vpow.pop %v1043
      %v1045 = vmul.f32 %v923, 1.442695
      %v1046 = vpow.pop %v1045
      %v1047 = vmul.f32 %v924, 1.442695
      %v1048 = vpow.pop %v1047
      %v1049 = vmul.f32 %v925, 1.442695
      %v1050 = vpow.pop %v1049
      %v1051 = vmul.f32 %v926, 1.442695
      %v1052 = vpow.pop %v1051
      %v1053 = vmul.f32 %v927, 1.442695
      %v1054 = vpow.pop %v1053
      %v1055 = vmul.f32 %v928, 1.442695
      %v1056 = vpow.pop %v1055
      %v1057 = vadd.f32 %v930, 1.0
      %v1058 = vadd.f32 %v932, 1.0
      %v1059 = vadd.f32 %v934, 1.0
      %v1060 = vadd.f32 %v936, 1.0
      %v1061 = vadd.f32 %v938, 1.0
      %v1062 = vadd.f32 %v940, 1.0
      %v1063 = vadd.f32 %v942, 1.0
      %v1064 = vadd.f32 %v944, 1.0
      %v1065 = vadd.f32 %v946, 1.0
      %v1066 = vadd.f32 %v948, 1.0
      %v1067 = vadd.f32 %v950, 1.0
      %v1068 = vadd.f32 %v952, 1.0
      %v1069 = vadd.f32 %v954, 1.0
      %v1070 = vadd.f32 %v956, 1.0
      %v1071 = vadd.f32 %v958, 1.0
      %v1072 = vadd.f32 %v960, 1.0
      %v1073 = vadd.f32 %v962, 1.0
      %v1074 = vadd.f32 %v964, 1.0
      %v1075 = vadd.f32 %v966, 1.0
      %v1076 = vadd.f32 %v968, 1.0
      %v1077 = vadd.f32 %v970, 1.0
      %v1078 = vadd.f32 %v972, 1.0
      %v1079 = vadd.f32 %v974, 1.0
      %v1080 = vadd.f32 %v976, 1.0
      %v1081 = vadd.f32 %v978, 1.0
      %v1082 = vadd.f32 %v980, 1.0
      %v1083 = vadd.f32 %v982, 1.0
      %v1084 = vadd.f32 %v984, 1.0
      %v1085 = vadd.f32 %v986, 1.0
      %v1086 = vadd.f32 %v988, 1.0
      %v1087 = vadd.f32 %v990, 1.0
      %v1088 = vadd.f32 %v992, 1.0
      %v1089 = vadd.f32 %v994, 1.0
      %v1090 = vadd.f32 %v996, 1.0
      %v1091 = vadd.f32 %v998, 1.0
      %v1092 = vadd.f32 %v1000, 1.0
      %v1093 = vadd.f32 %v1002, 1.0
      %v1094 = vadd.f32 %v1004, 1.0
      %v1095 = vadd.f32 %v1006, 1.0
      %v1096 = vadd.f32 %v1008, 1.0
      %v1097 = vadd.f32 %v1010, 1.0
      %v1098 = vadd.f32 %v1012, 1.0
      %v1099 = vadd.f32 %v1014, 1.0
      %v1100 = vadd.f32 %v1016, 1.0
      %v1101 = vadd.f32 %v1018, 1.0
      %v1102 = vadd.f32 %v1020, 1.0
      %v1103 = vadd.f32 %v1022, 1.0
      %v1104 = vadd.f32 %v1024, 1.0
      %v1105 = vadd.f32 %v1026, 1.0
      %v1106 = vadd.f32 %v1028, 1.0
      %v1107 = vadd.f32 %v1030, 1.0
      %v1108 = vadd.f32 %v1032, 1.0
      %v1109 = vadd.f32 %v1034, 1.0
      %v1110 = vadd.f32 %v1036, 1.0
      %v1111 = vadd.f32 %v1038, 1.0
      %v1112 = vadd.f32 %v1040, 1.0
      %v1113 = vadd.f32 %v1042, 1.0
      %v1114 = vadd.f32 %v1044, 1.0
      %v1115 = vadd.f32 %v1046, 1.0
      %v1116 = vadd.f32 %v1048, 1.0
      %v1117 = vadd.f32 %v1050, 1.0
      %v1118 = vadd.f32 %v1052, 1.0
      %v1119 = vadd.f32 %v1054, 1.0
      %v1120 = vadd.f32 %v1056, 1.0
      %v1121 = vrcp.pop %v1057
      %v1122 = vmul.f32 1.0, %v1121
      %v1123 = vrcp.pop %v1058
      %v1124 = vmul.f32 1.0, %v1123
      %v1125 = vrcp.pop %v1059
      %v1126 = vmul.f32 1.0, %v1125
      %v1127 = vrcp.pop %v1060
      %v1128 = vmul.f32 1.0, %v1127
      %v1129 = vrcp.pop %v1061
      %v1130 = vmul.f32 1.0, %v1129
      %v1131 = vrcp.pop %v1062
      %v1132 = vmul.f32 1.0, %v1131
      %v1133 = vrcp.pop %v1063
      %v1134 = vmul.f32 1.0, %v1133
      %v1135 = vrcp.pop %v1064
      %v1136 = vmul.f32 1.0, %v1135
      %v1137 = vrcp.pop %v1065
      %v1138 = vmul.f32 1.0, %v1137
      %v1139 = vrcp.pop %v1066
      %v1140 = vmul.f32 1.0, %v1139
      %v1141 = vrcp.pop %v1067
      %v1142 = vmul.f32 1.0, %v1141
      %v1143 = vrcp.pop %v1068
      %v1144 = vmul.f32 1.0, %v1143
      %v1145 = vrcp.pop %v1069
      %v1146 = vmul.f32 1.0, %v1145
      %v1147 = vrcp.pop %v1070
      %v1148 = vmul.f32 1.0, %v1147
      %v1149 = vrcp.pop %v1071
      %v1150 = vmul.f32 1.0, %v1149
      %v1151 = vrcp.pop %v1072
      %v1152 = vmul.f32 1.0, %v1151
      %v1153 = vrcp.pop %v1073
      %v1154 = vmul.f32 1.0, %v1153
      %v1155 = vrcp.pop %v1074
      %v1156 = vmul.f32 1.0, %v1155
      %v1157 = vrcp.pop %v1075
      %v1158 = vmul.f32 1.0, %v1157
      %v1159 = vrcp.pop %v1076
      %v1160 = vmul.f32 1.0, %v1159
      %v1161 = vrcp.pop %v1077
      %v1162 = vmul.f32 1.0, %v1161
      %v1163 = vrcp.pop %v1078
      %v1164 = vmul.f32 1.0, %v1163
      %v1165 = vrcp.pop %v1079
      %v1166 = vmul.f32 1.0, %v1165
      %v1167 = vrcp.pop %v1080
      %v1168 = vmul.f32 1.0, %v1167
      %v1169 = vrcp.pop %v1081
      %v1170 = vmul.f32 1.0, %v1169
      %v1171 = vrcp.pop %v1082
      %v1172 = vmul.f32 1.0, %v1171
      %v1173 = vrcp.pop %v1083
      %v1174 = vmul.f32 1.0, %v1173
      %v1175 = vrcp.pop %v1084
      %v1176 = vmul.f32 1.0, %v1175
      %v1177 = vrcp.pop %v1085
      %v1178 = vmul.f32 1.0, %v1177
      %v1179 = vrcp.pop %v1086
      %v1180 = vmul.f32 1.0, %v1179
      %v1181 = vrcp.pop %v1087
      %v1182 = vmul.f32 1.0, %v1181
      %v1183 = vrcp.pop %v1088
      %v1184 = vmul.f32 1.0, %v1183
      %v1185 = vrcp.pop %v1089
      %v1186 = vmul.f32 1.0, %v1185
      %v1187 = vrcp.pop %v1090
      %v1188 = vmul.f32 1.0, %v1187
      %v1189 = vrcp.pop %v1091
      %v1190 = vmul.f32 1.0, %v1189
      %v1191 = vrcp.pop %v1092
      %v1192 = vmul.f32 1.0, %v1191
      %v1193 = vrcp.pop %v1093
      %v1194 = vmul.f32 1.0, %v1193
      %v1195 = vrcp.pop %v1094
      %v1196 = vmul.f32 1.0, %v1195
      %v1197 = vrcp.pop %v1095
      %v1198 = vmul.f32 1.0, %v1197
      %v1199 = vrcp.pop %v1096
      %v1200 = vmul.f32 1.0, %v1199
      %v1201 = vrcp.pop %v1097
      %v1202 = vmul.f32 1.0, %v1201
      %v1203 = vrcp.pop %v1098
      %v1204 = vmul.f32 1.0, %v1203
      %v1205 = vrcp.pop %v1099
      %v1206 = vmul.f32 1.0, %v1205
      %v1207 = vrcp.pop %v1100
      %v1208 = vmul.f32 1.0, %v1207
      %v1209 = vrcp.pop %v1101
      %v1210 = vmul.f32 1.0, %v1209
      %v1211 = vrcp.pop %v1102
      %v1212 = vmul.f32 1.0, %v1211
      %v1213 = vrcp.pop %v1103
      %v1214 = vmul.f32 1.0, %v1213
      %v1215 = vrcp.pop %v1104
      %v1216 = vmul.f32 1.0, %v1215
      %v1217 = vrcp.pop %v1105
      %v1218 = vmul.f32 1.0, %v1217
      %v1219 = vrcp.pop %v1106
      %v1220 = vmul.f32 1.0, %v1219
      %v1221 = vrcp.pop %v1107
      %v1222 = vmul.f32 1.0, %v1221
      %v1223 = vrcp.pop %v1108
      %v1224 = vmul.f32 1.0, %v1223
      %v1225 = vrcp.pop %v1109
      %v1226 = vmul.f32 1.0, %v1225
      %v1227 = vrcp.pop %v1110
      %v1228 = vmul.f32 1.0, %v1227
      %v1229 = vrcp.pop %v1111
      %v1230 = vmul.f32 1.0, %v1229
      %v1231 = vrcp.pop %v1112
      %v1232 = vmul.f32 1.0, %v1231
      %v1233 = vrcp.pop %v1113
      %v1234 = vmul.f32 1.0, %v1233
      %v1235 = vrcp.pop %v1114
      %v1236 = vmul.f32 1.0, %v1235
      %v1237 = vrcp.pop %v1115
      %v1238 = vmul.f32 1.0, %v1237
      %v1239 = vrcp.pop %v1116
      %v1240 = vmul.f32 1.0, %v1239
      %v1241 = vrcp.pop %v1117
      %v1242 = vmul.f32 1.0, %v1241
      %v1243 = vrcp.pop %v1118
      %v1244 = vmul.f32 1.0, %v1243
      %v1245 = vrcp.pop %v1119
      %v1246 = vmul.f32 1.0, %v1245
      %v1247 = vrcp.pop %v1120
      %v1248 = vmul.f32 1.0, %v1247
      %v1249 = vmul.f32 %v611, %v1122
      %v1250 = vmul.f32 %v614, %v1124
      %v1251 = vmul.f32 %v619, %v1126
      %v1252 = vmul.f32 %v622, %v1128
      %v1253 = vmul.f32 %v627, %v1130
      %v1254 = vmul.f32 %v630, %v1132
      %v1255 = vmul.f32 %v635, %v1134
      %v1256 = vmul.f32 %v638, %v1136
      %v1257 = vmul.f32 %v643, %v1138
      %v1258 = vmul.f32 %v646, %v1140
      %v1259 = vmul.f32 %v651, %v1142
      %v1260 = vmul.f32 %v654, %v1144
      %v1261 = vmul.f32 %v659, %v1146
      %v1262 = vmul.f32 %v662, %v1148
      %v1263 = vmul.f32 %v667, %v1150
      %v1264 = vmul.f32 %v670, %v1152
      %v1265 = vmul.f32 %v675, %v1154
      %v1266 = vmul.f32 %v678, %v1156
      %v1267 = vmul.f32 %v683, %v1158
      %v1268 = vmul.f32 %v686, %v1160
      %v1269 = vmul.f32 %v691, %v1162
      %v1270 = vmul.f32 %v694, %v1164
      %v1271 = vmul.f32 %v699, %v1166
      %v1272 = vmul.f32 %v702, %v1168
      %v1273 = vmul.f32 %v707, %v1170
      %v1274 = vmul.f32 %v710, %v1172
      %v1275 = vmul.f32 %v715, %v1174
      %v1276 = vmul.f32 %v718, %v1176
      %v1277 = vmul.f32 %v723, %v1178
      %v1278 = vmul.f32 %v726, %v1180
      %v1279 = vmul.f32 %v731, %v1182
      %v1280 = vmul.f32 %v734, %v1184
      %v1281 = vmul.f32 %v739, %v1186
      %v1282 = vmul.f32 %v742, %v1188
      %v1283 = vmul.f32 %v747, %v1190
      %v1284 = vmul.f32 %v750, %v1192
      %v1285 = vmul.f32 %v755, %v1194
      %v1286 = vmul.f32 %v758, %v1196
      %v1287 = vmul.f32 %v763, %v1198
      %v1288 = vmul.f32 %v766, %v1200
      %v1289 = vmul.f32 %v771, %v1202
      %v1290 = vmul.f32 %v774, %v1204
      %v1291 = vmul.f32 %v779, %v1206
      %v1292 = vmul.f32 %v782, %v1208
      %v1293 = vmul.f32 %v787, %v1210
      %v1294 = vmul.f32 %v790, %v1212
      %v1295 = vmul.f32 %v795, %v1214
      %v1296 = vmul.f32 %v798, %v1216
      %v1297 = vmul.f32 %v803, %v1218
      %v1298 = vmul.f32 %v806, %v1220
      %v1299 = vmul.f32 %v811, %v1222
      %v1300 = vmul.f32 %v814, %v1224
      %v1301 = vmul.f32 %v819, %v1226
      %v1302 = vmul.f32 %v822, %v1228
      %v1303 = vmul.f32 %v827, %v1230
      %v1304 = vmul.f32 %v830, %v1232
      %v1305 = vmul.f32 %v835, %v1234
      %v1306 = vmul.f32 %v838, %v1236
      %v1307 = vmul.f32 %v843, %v1238
      %v1308 = vmul.f32 %v846, %v1240
      %v1309 = vmul.f32 %v851, %v1242
      %v1310 = vmul.f32 %v854, %v1244
      %v1311 = vmul.f32 %v859, %v1246
      %v1312 = vmul.f32 %v862, %v1248
      %v1313 = vpack.c.bf16 %v1250, %v1249
      %v1314 = vpack.c.bf16 %v1252, %v1251
      %v1315 = vpack.c.bf16 %v1254, %v1253
      %v1316 = vpack.c.bf16 %v1256, %v1255
      %v1317 = vpack.c.bf16 %v1258, %v1257
      %v1318 = vpack.c.bf16 %v1260, %v1259
      %v1319 = vpack.c.bf16 %v1262, %v1261
      %v1320 = vpack.c.bf16 %v1264, %v1263
      %v1321 = vpack.c.bf16 %v1266, %v1265
      %v1322 = vpack.c.bf16 %v1268, %v1267
      %v1323 = vpack.c.bf16 %v1270, %v1269
      %v1324 = vpack.c.bf16 %v1272, %v1271
      %v1325 = vpack.c.bf16 %v1274, %v1273
      %v1326 = vpack.c.bf16 %v1276, %v1275
      %v1327 = vpack.c.bf16 %v1278, %v1277
      %v1328 = vpack.c.bf16 %v1280, %v1279
      %v1329 = vpack.c.bf16 %v1282, %v1281
      %v1330 = vpack.c.bf16 %v1284, %v1283
      %v1331 = vpack.c.bf16 %v1286, %v1285
      %v1332 = vpack.c.bf16 %v1288, %v1287
      %v1333 = vpack.c.bf16 %v1290, %v1289
      %v1334 = vpack.c.bf16 %v1292, %v1291
      %v1335 = vpack.c.bf16 %v1294, %v1293
      %v1336 = vpack.c.bf16 %v1296, %v1295
      %v1337 = vpack.c.bf16 %v1298, %v1297
      %v1338 = vpack.c.bf16 %v1300, %v1299
      %v1339 = vpack.c.bf16 %v1302, %v1301
      %v1340 = vpack.c.bf16 %v1304, %v1303
      %v1341 = vpack.c.bf16 %v1306, %v1305
      %v1342 = vpack.c.bf16 %v1308, %v1307
      %v1343 = vpack.c.bf16 %v1310, %v1309
      %v1344 = vpack.c.bf16 %v1312, %v1311
      %v1377 = vunpack.c.l.b16 %v1313
      %v1378 = vunpack.c.h.b16 %v1313
      %v1379 = vunpack.c.l.b16 %v1314
      %v1380 = vunpack.c.h.b16 %v1314
      %v1381 = vunpack.c.l.b16 %v1315
      %v1382 = vunpack.c.h.b16 %v1315
      %v1383 = vunpack.c.l.b16 %v1316
      %v1384 = vunpack.c.h.b16 %v1316
      %v1385 = vunpack.c.l.b16 %v1317
      %v1386 = vunpack.c.h.b16 %v1317
      %v1387 = vunpack.c.l.b16 %v1318
      %v1388 = vunpack.c.h.b16 %v1318
      %v1389 = vunpack.c.l.b16 %v1319
      %v1390 = vunpack.c.h.b16 %v1319
      %v1391 = vunpack.c.l.b16 %v1320
      %v1392 = vunpack.c.h.b16 %v1320
      %v1393 = vunpack.c.l.b16 %v1321
      %v1394 = vunpack.c.h.b16 %v1321
      %v1395 = vunpack.c.l.b16 %v1322
      %v1396 = vunpack.c.h.b16 %v1322
      %v1397 = vunpack.c.l.b16 %v1323
      %v1398 = vunpack.c.h.b16 %v1323
      %v1399 = vunpack.c.l.b16 %v1324
      %v1400 = vunpack.c.h.b16 %v1324
      %v1401 = vunpack.c.l.b16 %v1325
      %v1402 = vunpack.c.h.b16 %v1325
      %v1403 = vunpack.c.l.b16 %v1326
      %v1404 = vunpack.c.h.b16 %v1326
      %v1405 = vunpack.c.l.b16 %v1327
      %v1406 = vunpack.c.h.b16 %v1327
      %v1407 = vunpack.c.l.b16 %v1328
      %v1408 = vunpack.c.h.b16 %v1328
      %v1409 = vunpack.c.l.b16 %v1329
      %v1410 = vunpack.c.h.b16 %v1329
      %v1411 = vunpack.c.l.b16 %v1330
      %v1412 = vunpack.c.h.b16 %v1330
      %v1413 = vunpack.c.l.b16 %v1331
      %v1414 = vunpack.c.h.b16 %v1331
      %v1415 = vunpack.c.l.b16 %v1332
      %v1416 = vunpack.c.h.b16 %v1332
      %v1417 = vunpack.c.l.b16 %v1333
      %v1418 = vunpack.c.h.b16 %v1333
      %v1419 = vunpack.c.l.b16 %v1334
      %v1420 = vunpack.c.h.b16 %v1334
      %v1421 = vunpack.c.l.b16 %v1335
      %v1422 = vunpack.c.h.b16 %v1335
      %v1423 = vunpack.c.l.b16 %v1336
      %v1424 = vunpack.c.h.b16 %v1336
      %v1425 = vunpack.c.l.b16 %v1337
      %v1426 = vunpack.c.h.b16 %v1337
      %v1427 = vunpack.c.l.b16 %v1338
      %v1428 = vunpack.c.h.b16 %v1338
      %v1429 = vunpack.c.l.b16 %v1339
      %v1430 = vunpack.c.h.b16 %v1339
      %v1431 = vunpack.c.l.b16 %v1340
      %v1432 = vunpack.c.h.b16 %v1340
      %v1433 = vunpack.c.l.b16 %v1341
      %v1434 = vunpack.c.h.b16 %v1341
      %v1435 = vunpack.c.l.b16 %v1342
      %v1436 = vunpack.c.h.b16 %v1342
      %v1437 = vunpack.c.l.b16 %v1343
      %v1438 = vunpack.c.h.b16 %v1343
      %v1439 = vunpack.c.l.b16 %v1344
      %v1440 = vunpack.c.h.b16 %v1344
      %v1441 = vpack.c.b16 %v1377, %v1377
      %v1442 = vpack.c.b16 %v1378, %v1378
      %v1443 = vpack.c.b16 %v1379, %v1379
      %v1444 = vpack.c.b16 %v1380, %v1380
      %v1445 = vpack.c.b16 %v1381, %v1381
      %v1446 = vpack.c.b16 %v1382, %v1382
      %v1447 = vpack.c.b16 %v1383, %v1383
      %v1448 = vpack.c.b16 %v1384, %v1384
      %v1449 = vpack.c.b16 %v1385, %v1385
      %v1450 = vpack.c.b16 %v1386, %v1386
      %v1451 = vpack.c.b16 %v1387, %v1387
      %v1452 = vpack.c.b16 %v1388, %v1388
      %v1453 = vpack.c.b16 %v1389, %v1389
      %v1454 = vpack.c.b16 %v1390, %v1390
      %v1455 = vpack.c.b16 %v1391, %v1391
      %v1456 = vpack.c.b16 %v1392, %v1392
      %v1457 = vpack.c.b16 %v1393, %v1393
      %v1458 = vpack.c.b16 %v1394, %v1394
      %v1459 = vpack.c.b16 %v1395, %v1395
      %v1460 = vpack.c.b16 %v1396, %v1396
      %v1461 = vpack.c.b16 %v1397, %v1397
      %v1462 = vpack.c.b16 %v1398, %v1398
      %v1463 = vpack.c.b16 %v1399, %v1399
      %v1464 = vpack.c.b16 %v1400, %v1400
      %v1465 = vpack.c.b16 %v1401, %v1401
      %v1466 = vpack.c.b16 %v1402, %v1402
      %v1467 = vpack.c.b16 %v1403, %v1403
      %v1468 = vpack.c.b16 %v1404, %v1404
      %v1469 = vpack.c.b16 %v1405, %v1405
      %v1470 = vpack.c.b16 %v1406, %v1406
      %v1471 = vpack.c.b16 %v1407, %v1407
      %v1472 = vpack.c.b16 %v1408, %v1408
      %v1473 = vpack.c.b16 %v1409, %v1409
      %v1474 = vpack.c.b16 %v1410, %v1410
      %v1475 = vpack.c.b16 %v1411, %v1411
      %v1476 = vpack.c.b16 %v1412, %v1412
      %v1477 = vpack.c.b16 %v1413, %v1413
      %v1478 = vpack.c.b16 %v1414, %v1414
      %v1479 = vpack.c.b16 %v1415, %v1415
      %v1480 = vpack.c.b16 %v1416, %v1416
      %v1481 = vpack.c.b16 %v1417, %v1417
      %v1482 = vpack.c.b16 %v1418, %v1418
      %v1483 = vpack.c.b16 %v1419, %v1419
      %v1484 = vpack.c.b16 %v1420, %v1420
      %v1485 = vpack.c.b16 %v1421, %v1421
      %v1486 = vpack.c.b16 %v1422, %v1422
      %v1487 = vpack.c.b16 %v1423, %v1423
      %v1488 = vpack.c.b16 %v1424, %v1424
      %v1489 = vpack.c.b16 %v1425, %v1425
      %v1490 = vpack.c.b16 %v1426, %v1426
      %v1491 = vpack.c.b16 %v1427, %v1427
      %v1492 = vpack.c.b16 %v1428, %v1428
      %v1493 = vpack.c.b16 %v1429, %v1429
      %v1494 = vpack.c.b16 %v1430, %v1430
      %v1495 = vpack.c.b16 %v1431, %v1431
      %v1496 = vpack.c.b16 %v1432, %v1432
      %v1497 = vpack.c.b16 %v1433, %v1433
      %v1498 = vpack.c.b16 %v1434, %v1434
      %v1499 = vpack.c.b16 %v1435, %v1435
      %v1500 = vpack.c.b16 %v1436, %v1436
      %v1501 = vpack.c.b16 %v1437, %v1437
      %v1502 = vpack.c.b16 %v1438, %v1438
      %v1503 = vpack.c.b16 %v1439, %v1439
      %v1504 = vpack.c.b16 %v1440, %v1440
      %vm1569 = vcmask 257024
      %1570 = vst.msk [vmem:[%s223] sm:$0xf] %vm1569, %v1441
      %1571 = vst.msk [vmem:[%s223 + $0x4] sm:$0xf] %vm1569, %v1442
      %1572 = vst.msk [vmem:[%s223 + $0x8] sm:$0xf] %vm1569, %v1443
      %1573 = vst.msk [vmem:[%s223 + $0xc] sm:$0xf] %vm1569, %v1444
      %1574 = vst.msk [vmem:[%s223 + $0x10] sm:$0xf] %vm1569, %v1445
      %1575 = vst.msk [vmem:[%s223 + $0x14] sm:$0xf] %vm1569, %v1446
      %1576 = vst.msk [vmem:[%s223 + $0x18] sm:$0xf] %vm1569, %v1447
      %1577 = vst.msk [vmem:[%s223 + $0x1c] sm:$0xf] %vm1569, %v1448
      %1578 = vst.msk [vmem:[%s223 + $0x20] sm:$0xf] %vm1569, %v1449
      %1579 = vst.msk [vmem:[%s223 + $0x24] sm:$0xf] %vm1569, %v1450
      %1580 = vst.msk [vmem:[%s223 + $0x28] sm:$0xf] %vm1569, %v1451
      %1581 = vst.msk [vmem:[%s223 + $0x2c] sm:$0xf] %vm1569, %v1452
      %1582 = vst.msk [vmem:[%s223 + $0x30] sm:$0xf] %vm1569, %v1453
      %1583 = vst.msk [vmem:[%s223 + $0x34] sm:$0xf] %vm1569, %v1454
      %1584 = vst.msk [vmem:[%s223 + $0x38] sm:$0xf] %vm1569, %v1455
      %1585 = vst.msk [vmem:[%s223 + $0x3c] sm:$0xf] %vm1569, %v1456
      %1586 = vst.msk [vmem:[%s223 + $0x40] sm:$0xf] %vm1569, %v1457
      %1587 = vst.msk [vmem:[%s223 + $0x44] sm:$0xf] %vm1569, %v1458
      %1588 = vst.msk [vmem:[%s223 + $0x48] sm:$0xf] %vm1569, %v1459
      %1589 = vst.msk [vmem:[%s223 + $0x4c] sm:$0xf] %vm1569, %v1460
      %1590 = vst.msk [vmem:[%s223 + $0x50] sm:$0xf] %vm1569, %v1461
      %1591 = vst.msk [vmem:[%s223 + $0x54] sm:$0xf] %vm1569, %v1462
      %1592 = vst.msk [vmem:[%s223 + $0x58] sm:$0xf] %vm1569, %v1463
      %1593 = vst.msk [vmem:[%s223 + $0x5c] sm:$0xf] %vm1569, %v1464
      %1594 = vst.msk [vmem:[%s223 + $0x60] sm:$0xf] %vm1569, %v1465
      %1595 = vst.msk [vmem:[%s223 + $0x64] sm:$0xf] %vm1569, %v1466
      %1596 = vst.msk [vmem:[%s223 + $0x68] sm:$0xf] %vm1569, %v1467
      %1597 = vst.msk [vmem:[%s223 + $0x6c] sm:$0xf] %vm1569, %v1468
      %1598 = vst.msk [vmem:[%s223 + $0x70] sm:$0xf] %vm1569, %v1469
      %1599 = vst.msk [vmem:[%s223 + $0x74] sm:$0xf] %vm1569, %v1470
      %1600 = vst.msk [vmem:[%s223 + $0x78] sm:$0xf] %vm1569, %v1471
      %1601 = vst.msk [vmem:[%s223 + $0x7c] sm:$0xf] %vm1569, %v1472
      %1602 = vst.msk [vmem:[%s223 + $0x80] sm:$0xf] %vm1569, %v1473
      %1603 = vst.msk [vmem:[%s223 + $0x84] sm:$0xf] %vm1569, %v1474
      %1604 = vst.msk [vmem:[%s223 + $0x88] sm:$0xf] %vm1569, %v1475
      %1605 = vst.msk [vmem:[%s223 + $0x8c] sm:$0xf] %vm1569, %v1476
      %1606 = vst.msk [vmem:[%s223 + $0x90] sm:$0xf] %vm1569, %v1477
      %1607 = vst.msk [vmem:[%s223 + $0x94] sm:$0xf] %vm1569, %v1478
      %1608 = vst.msk [vmem:[%s223 + $0x98] sm:$0xf] %vm1569, %v1479
      %1609 = vst.msk [vmem:[%s223 + $0x9c] sm:$0xf] %vm1569, %v1480
      %1610 = vst.msk [vmem:[%s223 + $0xa0] sm:$0xf] %vm1569, %v1481
      %1611 = vst.msk [vmem:[%s223 + $0xa4] sm:$0xf] %vm1569, %v1482
      %1612 = vst.msk [vmem:[%s223 + $0xa8] sm:$0xf] %vm1569, %v1483
      %1613 = vst.msk [vmem:[%s223 + $0xac] sm:$0xf] %vm1569, %v1484
      %1614 = vst.msk [vmem:[%s223 + $0xb0] sm:$0xf] %vm1569, %v1485
      %1615 = vst.msk [vmem:[%s223 + $0xb4] sm:$0xf] %vm1569, %v1486
      %1616 = vst.msk [vmem:[%s223 + $0xb8] sm:$0xf] %vm1569, %v1487
      %1617 = vst.msk [vmem:[%s223 + $0xbc] sm:$0xf] %vm1569, %v1488
      %1618 = vst.msk [vmem:[%s223 + $0xc0] sm:$0xf] %vm1569, %v1489
      %1619 = vst.msk [vmem:[%s223 + $0xc4] sm:$0xf] %vm1569, %v1490
      %1620 = vst.msk [vmem:[%s223 + $0xc8] sm:$0xf] %vm1569, %v1491
      %1621 = vst.msk [vmem:[%s223 + $0xcc] sm:$0xf] %vm1569, %v1492
      %1622 = vst.msk [vmem:[%s223 + $0xd0] sm:$0xf] %vm1569, %v1493
      %1623 = vst.msk [vmem:[%s223 + $0xd4] sm:$0xf] %vm1569, %v1494
      %1624 = vst.msk [vmem:[%s223 + $0xd8] sm:$0xf] %vm1569, %v1495
      %1625 = vst.msk [vmem:[%s223 + $0xdc] sm:$0xf] %vm1569, %v1496
      %1626 = vst.msk [vmem:[%s223 + $0xe0] sm:$0xf] %vm1569, %v1497
      %1627 = vst.msk [vmem:[%s223 + $0xe4] sm:$0xf] %vm1569, %v1498
      %1628 = vst.msk [vmem:[%s223 + $0xe8] sm:$0xf] %vm1569, %v1499
      %1629 = vst.msk [vmem:[%s223 + $0xec] sm:$0xf] %vm1569, %v1500
      %1630 = vst.msk [vmem:[%s223 + $0xf0] sm:$0xf] %vm1569, %v1501
      %1631 = vst.msk [vmem:[%s223 + $0xf4] sm:$0xf] %vm1569, %v1502
      %1632 = vst.msk [vmem:[%s223 + $0xf8] sm:$0xf] %vm1569, %v1503
      %1633 = vst.msk [vmem:[%s223 + $0xfc] sm:$0xf] %vm1569, %v1504
      %s1634 = smul.u32 64, %s18
      %p1635 = scmp.lt.s32.totalorder %s1634, 255
      %s1636 = scalar_select %p1635, %s1634, 255
      %p1637 = scmp.lt.s32.totalorder %s19, 0
      %s1638 = scalar_select %p1637, %s19, 0
      %s1639 = sadd.s32 %s1638, %s1636
      %s1640 = smul.addr %s1639, 4
      %s1641 = scalar_lea.vmem %s3, %s1640
      // Predicated region
      $region33: #{tpu_custom_call.1} parent=31 // pred_check
        %p1642 = pneg %p124
      $region34: #{tpu_custom_call.1} parent=31 // pred_check_branch
        %1644 = sbr.rel (%p1642) target = $region36
      $region35: #{tpu_custom_call.1} parent=31 // pred_region
        %s1645 = smul.u32 64, %s18
      $region36: #{tpu_custom_call.1} parent=31 // pred_fallthru
        _
    $region32: #{tpu_custom_call.1} parent=5 // pred_fallthru
      _
    %p1646 = scmp.le.s32.totalorder 2, %s9
    // Predicated region
    $region37: #{tpu_custom_call.1} parent=5 // pred_check
      %p1647 = pneg %p1646
    $region38: #{tpu_custom_call.1} parent=5 // pred_check_branch
      %1649 = sbr.rel (%p1647) target = $region40
    $region39: #{tpu_custom_call.1} parent=5 // pred_region
      %s1650 = ssub.s32 %s9, 2
      // Predicated region
      $region41: #{tpu_custom_call.1} parent=39 // pred_check
        %p1651 = pneg %p130
      $region42: #{tpu_custom_call.1} parent=39 // pred_check_branch
        %1653 = sbr.rel (%p1651) target = $region44
      $region43: #{tpu_custom_call.1} parent=39 // pred_region
        %s1654 = smul.u32 64, %s20
        %p1655 = scmp.lt.s32.totalorder %s1654, 255
        %s1656 = scalar_select %p1655, %s1654, 255
        %p1657 = scmp.lt.s32.totalorder %s21, 0
        %s1658 = scalar_select %p1657, %s21, 0
        %s1659 = sadd.s32 %s1658, %s1656
        %s1660 = smul.addr %s1659, 4
        %s1661 = scalar_lea.vmem %s3, %s1660
      $region44: #{tpu_custom_call.1} parent=39 // pred_fallthru
        _
    $region40: #{tpu_custom_call.1} parent=5 // pred_fallthru
      _
  $region6: #{tpu_custom_call.1} parent=0 // loop_footer
    %s13 = sadd.s32 1, %s9
  $region7: #{tpu_custom_call.1} parent=0 // loop_footer_branch
    %8 = sbr.rel target = $region3
  $region8: #{tpu_custom_call.1} parent=0 // loop_exit
    _

</llo_original>
